<compile_context>
chip_gen: v7x
topology: tpu7x:2x2x1
jax: 0.10.0
libtpu: 0.0.40
codegen_flags: <defaults>
</compile_context>

<pallas_src>
import math
import numpy as np
import jax
import jax.numpy as jnp
from jax.experimental import pallas as pl
from jax.experimental.pallas import tpu as pltpu

HIDDEN = 32
HEADS = 4
HEAD_DIM = HIDDEN // HEADS
LN_EPS = 1e-12   # matches torch LayerNorm default; effectively zero in f32 (harmless)


def mha_kernel(a_ref, b_ref, w_ref, vec_ref, out_ref):
    Bc, Sa, H = a_ref.shape          # batch chunk handled by this grid step
    _, Sb, _ = b_ref.shape
    D = HEAD_DIM

    a = a_ref[...]                   # (Bc, Sa, H)  query-side input
    bseq = b_ref[...]                # (Bc, Sb, H)  key/value-side input
    w = w_ref[...]                   # (H, 4H) = [Wq | Wk | Wv | Wdense]
    vec = vec_ref[...]               # (6, H)  = [bq; bk; bv; bdense; gamma; beta]

    a_flat = a.reshape(Bc * Sa, H)   # leading-dim merge (layout-trivial)
    b_flat = bseq.reshape(Bc * Sb, H)

    # Two flat full-width MXU matmuls for all projections (heads split afterwards).
    q_flat = jnp.dot(a_flat, w[:, 0 * H:1 * H],
                     preferred_element_type=jnp.float32) + vec[0:1, :]
    kv_flat = jnp.dot(b_flat, w[:, 1 * H:3 * H],
                      preferred_element_type=jnp.float32)
    k_flat = kv_flat[:, :H] + vec[1:2, :]
    v_flat = kv_flat[:, H:] + vec[2:3, :]

    scale = 1.0 / math.sqrt(D)
    ctx_heads = []
    for h in range(HEADS):           # unrolled; per-head slices stay in one lane group
        sl = slice(h * D, (h + 1) * D)
        qh = q_flat[:, sl].reshape(Bc, Sa, D)
        kh = k_flat[:, sl].reshape(Bc, Sb, D)
        vh = v_flat[:, sl].reshape(Bc, Sb, D)
        s = jnp.einsum('bqd,bkd->bqk', qh, kh,
                       preferred_element_type=jnp.float32) * scale
        s = s - jnp.max(s, axis=-1, keepdims=True)
        p = jnp.exp(s)
        p = p / jnp.sum(p, axis=-1, keepdims=True)   # exact reciprocal (tolerance-safe)
        ctxh = jnp.einsum('bqk,bkd->bqd', p, vh,
                          preferred_element_type=jnp.float32)     # (Bc, Sa, D)
        ctx_heads.append(ctxh.reshape(Bc * Sa, D))
    # TODO(synk): attention-prob / projection dropout are identity (eval-mode semantics).

    ctx_flat = jnp.concatenate(ctx_heads, axis=-1)                # (Bc*Sa, H)

    # Dense projection == torch.einsum('bfnd,ndh->bfh', ctx, W) + b, with the head
    # sum folded into one flat (Bc*Sa, H) @ (H, H) matmul.
    proj_flat = jnp.dot(ctx_flat, w[:, 3 * H:4 * H],
                        preferred_element_type=jnp.float32) + vec[3:4, :]
    proj = proj_flat.reshape(Bc, Sa, H)

    # Residual + LayerNorm.
    resid = a + proj
    mean = jnp.mean(resid, axis=-1, keepdims=True)
    var = jnp.mean((resid - mean) ** 2, axis=-1, keepdims=True)
    ln = (resid - mean) * jax.lax.rsqrt(var + LN_EPS)
    out_ref[...] = ln * vec[4:5, :] + vec[5:6, :]


def pack_params(params):
    """Pack the 10 torch-layout parameters into 2 fused kernel operands.

    Called ONCE (at init), not per forward: pure parameter plumbing stays off the
    per-call path.  Weights are stored as [H_in, H_out] (i.e. torch weight.T).
    """
    wq, bq, wk, bk, wv, bv, wd, bd, gamma, beta = params
    w_all = jnp.concatenate([wq, wk, wv, wd], axis=1)            # (H, 4H) = (32, 128)
    vec = jnp.concatenate([bq, bk, bv, bd, gamma, beta], axis=0)  # (6, H)
    return w_all, vec


def mha_forward(a, b, w_all, vec, *, num_batch_blocks=1):
    """num_batch_blocks=1 is optimal at these sizes (single grid step, single TC);
    only pass 2 on v7x when per-step work amortizes the ~0.35 us pipeline overhead."""
    B, Sa, H = a.shape
    _, Sb, _ = b.shape
    assert B % num_batch_blocks == 0
    Bc = B // num_batch_blocks

    return pl.pallas_call(
        mha_kernel,
        out_shape=jax.ShapeDtypeStruct((B, Sa, H), jnp.float32),
        grid_spec=pltpu.PrefetchScalarGridSpec(
            num_scalar_prefetch=0,
            grid=(num_batch_blocks,),
            in_specs=[
                pl.BlockSpec((Bc, Sa, H), lambda i: (i, 0, 0)),
                pl.BlockSpec((Bc, Sb, H), lambda i: (i, 0, 0)),
                # Constant block index: weights stay resident across grid steps.
                pl.BlockSpec((H, 4 * H), lambda i: (0, 0)),
                pl.BlockSpec((6, H), lambda i: (0, 0)),
            ],
            out_specs=pl.BlockSpec((Bc, Sa, H), lambda i: (i, 0, 0))),
        compiler_params=pltpu.CompilerParams(
            dimension_semantics=("parallel",)),
    )(a, b, w_all, vec)


def mha_reference(a, b, params):
    """Pure-JAX reference replicating the PyTorch forward (dropout = identity)."""
    wq, bq, wk, bk, wv, bv, wd, bd, gamma, beta = params
    B, Sa, H = a.shape
    q = a @ wq + bq
    k = b @ wk + bk
    v = b @ wv + bv

    def split(x):
        B_, S, _ = x.shape
        return x.reshape(B_, S, HEADS, HEAD_DIM).transpose(0, 2, 1, 3)

    qh, kh, vh = split(q), split(k), split(v)
    scores = jnp.einsum('bhqd,bhkd->bhqk', qh, kh) / math.sqrt(HEAD_DIM)
    probs = jax.nn.softmax(scores, axis=-1)
    ctx = jnp.einsum('bhqk,bhkd->bhqd', probs, vh)
    ctx = ctx.transpose(0, 2, 1, 3).reshape(B, Sa, H)
    proj = ctx @ wd + bd
    resid = a + proj
    mean = resid.mean(-1, keepdims=True)
    var = ((resid - mean) ** 2).mean(-1, keepdims=True)
    return (resid - mean) / jnp.sqrt(var + LN_EPS) * gamma + beta


if __name__ == "__main__":
    key = jax.random.PRNGKey(0)
    ks = jax.random.split(key, 8)
    B, Sa, Sb, H = 2, 8, 8, HIDDEN

    a = jax.random.normal(ks[0], (B, Sa, H), jnp.float32)
    b = jax.random.normal(ks[1], (B, Sb, H), jnp.float32)

    # Deterministic parameter init (weights stored as [H_in, H_out], i.e. torch weight.T).
    scale = 0.02
    wq = scale * jax.random.normal(ks[2], (H, H), jnp.float32)
    wk = scale * jax.random.normal(ks[3], (H, H), jnp.float32)
    wv = scale * jax.random.normal(ks[4], (H, H), jnp.float32)
    wd = scale * jax.random.normal(ks[5], (H, H), jnp.float32)
    bq = scale * jax.random.normal(ks[6], (1, H), jnp.float32)
    bk = jnp.zeros((1, H), jnp.float32)
    bv = scale * jax.random.normal(ks[7], (1, H), jnp.float32)
    bd = jnp.zeros((1, H), jnp.float32)
    gamma = jnp.ones((1, H), jnp.float32)
    beta = jnp.zeros((1, H), jnp.float32)

    params = (wq, bq, wk, bk, wv, bv, wd, bd, gamma, beta)

    # Pack once at init time (hoisted out of the forward path).
    w_all, vec = pack_params(params)
    w_all, vec = jax.block_until_ready((w_all, vec))

    out = mha_forward(a, b, w_all, vec)        # single grid step, weights resident
    out = jax.block_until_ready(out)

    ref = mha_reference(a, b, params)
    np.testing.assert_allclose(np.asarray(out), np.asarray(ref), rtol=1e-4, atol=1e-4)

    print("KERNEL_OK")
</pallas_src>

<mosaic_0001>
module attributes {stable_mosaic.version = 11 : i64} {
  func.func @mha_kernel(%arg0: i32, %arg1: memref<2x8x32xf32, #tpu.memory_space<vmem>>, %arg2: memref<2x8x32xf32, #tpu.memory_space<vmem>>, %arg3: memref<32x128xf32, #tpu.memory_space<vmem>>, %arg4: memref<6x32xf32, #tpu.memory_space<vmem>>, %arg5: memref<2x8x32xf32, #tpu.memory_space<vmem>>) attributes {dimension_semantics = [#tpu.dimension_semantics<parallel>], iteration_bounds = array<i64: 1>, scalar_prefetch = 0 : i64, scratch_operands = 0 : i64, tpu.core_type = #tpu.core_type<tc>, window_params = [{transform_indices = @transform_0, window_bounds = array<i64: 2, 8, 32>}, {transform_indices = @transform_1, window_bounds = array<i64: 2, 8, 32>}, {pipeline_mode = #tpu.pipeline_mode<synchronous>, transform_indices = @transform_2, window_bounds = array<i64: 32, 128>}, {pipeline_mode = #tpu.pipeline_mode<synchronous>, transform_indices = @transform_3, window_bounds = array<i64: 6, 32>}, {transform_indices = @transform_4, window_bounds = array<i64: 2, 8, 32>}]} {
    %c0 = arith.constant 0 : index
    %c0_0 = arith.constant 0 : index
    %c0_1 = arith.constant 0 : index
    %0 = vector.load %arg1[%c0, %c0_0, %c0_1] : memref<2x8x32xf32, #tpu.memory_space<vmem>>, vector<2x8x32xf32>
    %c0_2 = arith.constant 0 : index
    %c0_3 = arith.constant 0 : index
    %c0_4 = arith.constant 0 : index
    %1 = vector.load %arg2[%c0_2, %c0_3, %c0_4] : memref<2x8x32xf32, #tpu.memory_space<vmem>>, vector<2x8x32xf32>
    %c0_5 = arith.constant 0 : index
    %c0_6 = arith.constant 0 : index
    %2 = vector.load %arg3[%c0_5, %c0_6] : memref<32x128xf32, #tpu.memory_space<vmem>>, vector<32x128xf32>
    %c0_7 = arith.constant 0 : index
    %c0_8 = arith.constant 0 : index
    %3 = vector.load %arg4[%c0_7, %c0_8] : memref<6x32xf32, #tpu.memory_space<vmem>>, vector<6x32xf32>
    %4 = vector.shape_cast %0 : vector<2x8x32xf32> to vector<16x32xf32>
    %5 = vector.shape_cast %1 : vector<2x8x32xf32> to vector<16x32xf32>
    %6 = vector.extract_strided_slice %2 {offsets = [0, 0], sizes = [32, 32], strides = [1, 1]} : vector<32x128xf32> to vector<32x32xf32>
    %cst = arith.constant dense<0.000000e+00> : vector<16x32xf32>
    %7 = tpu.matmul %4, %6, %cst {dimension_numbers = #tpu.dot_dimension_numbers<[1], [0], [0], [1], [0, 0, 1, 1], [], []>} : vector<16x32xf32>, vector<32x32xf32>, vector<16x32xf32> -> vector<16x32xf32>
    %8 = vector.extract_strided_slice %3 {offsets = [0, 0], sizes = [1, 32], strides = [1, 1]} : vector<6x32xf32> to vector<1x32xf32>
    %9 = vector.broadcast %8 : vector<1x32xf32> to vector<16x32xf32>
    %10 = arith.addf %7, %9 : vector<16x32xf32>
    %11 = vector.extract_strided_slice %2 {offsets = [0, 32], sizes = [32, 64], strides = [1, 1]} : vector<32x128xf32> to vector<32x64xf32>
    %cst_9 = arith.constant dense<0.000000e+00> : vector<16x64xf32>
    %12 = tpu.matmul %5, %11, %cst_9 {dimension_numbers = #tpu.dot_dimension_numbers<[1], [0], [0], [1], [0, 0, 1, 1], [], []>} : vector<16x32xf32>, vector<32x64xf32>, vector<16x64xf32> -> vector<16x64xf32>
    %13 = vector.extract_strided_slice %12 {offsets = [0, 0], sizes = [16, 32], strides = [1, 1]} : vector<16x64xf32> to vector<16x32xf32>
    %14 = vector.extract_strided_slice %3 {offsets = [1, 0], sizes = [1, 32], strides = [1, 1]} : vector<6x32xf32> to vector<1x32xf32>
    %15 = vector.broadcast %14 : vector<1x32xf32> to vector<16x32xf32>
    %16 = arith.addf %13, %15 : vector<16x32xf32>
    %17 = vector.extract_strided_slice %12 {offsets = [0, 32], sizes = [16, 32], strides = [1, 1]} : vector<16x64xf32> to vector<16x32xf32>
    %18 = vector.extract_strided_slice %3 {offsets = [2, 0], sizes = [1, 32], strides = [1, 1]} : vector<6x32xf32> to vector<1x32xf32>
    %19 = vector.broadcast %18 : vector<1x32xf32> to vector<16x32xf32>
    %20 = arith.addf %17, %19 : vector<16x32xf32>
    %21 = vector.extract_strided_slice %10 {offsets = [0, 0], sizes = [16, 8], strides = [1, 1]} : vector<16x32xf32> to vector<16x8xf32>
    %22 = vector.shape_cast %21 : vector<16x8xf32> to vector<2x8x8xf32>
    %23 = vector.extract_strided_slice %16 {offsets = [0, 0], sizes = [16, 8], strides = [1, 1]} : vector<16x32xf32> to vector<16x8xf32>
    %24 = vector.shape_cast %23 : vector<16x8xf32> to vector<2x8x8xf32>
    %25 = vector.extract_strided_slice %20 {offsets = [0, 0], sizes = [16, 8], strides = [1, 1]} : vector<16x32xf32> to vector<16x8xf32>
    %26 = vector.shape_cast %25 : vector<16x8xf32> to vector<2x8x8xf32>
    "tpu.trace_start"() <{level = 10 : i32, message = "bqd,bkd->bqk"}> : () -> ()
    %cst_10 = arith.constant dense<0.000000e+00> : vector<2x8x8xf32>
    %27 = tpu.matmul %22, %24, %cst_10 {dimension_numbers = #tpu.dot_dimension_numbers<[2], [2], [1], [1], [0, 0, 0, 1, 1, 1], [0], [0]>} : vector<2x8x8xf32>, vector<2x8x8xf32>, vector<2x8x8xf32> -> vector<2x8x8xf32>
    "tpu.trace_stop"() : () -> ()
    %cst_11 = arith.constant 0.353553385 : f32
    %28 = vector.broadcast %cst_11 : f32 to vector<2x8x8xf32>
    %29 = arith.mulf %27, %28 : vector<2x8x8xf32>
    %cst_12 = arith.constant dense<0xFF800000> : vector<2x8xf32>
    %30 = vector.multi_reduction <maximumf>, %29, %cst_12 [2] : vector<2x8x8xf32> to vector<2x8xf32>
    %31 = vector.shape_cast %30 : vector<2x8xf32> to vector<2x8x1xf32>
    %32 = vector.broadcast %31 : vector<2x8x1xf32> to vector<2x8x8xf32>
    %33 = arith.subf %29, %32 : vector<2x8x8xf32>
    %34 = math.exp %33 : vector<2x8x8xf32>
    %cst_13 = arith.constant dense<0.000000e+00> : vector<2x8xf32>
    %35 = vector.multi_reduction <add>, %34, %cst_13 [2] : vector<2x8x8xf32> to vector<2x8xf32>
    %36 = vector.shape_cast %35 : vector<2x8xf32> to vector<2x8x1xf32>
    %37 = vector.broadcast %36 : vector<2x8x1xf32> to vector<2x8x8xf32>
    %38 = arith.divf %34, %37 : vector<2x8x8xf32>
    "tpu.trace_start"() <{level = 10 : i32, message = "bqk,bkd->bqd"}> : () -> ()
    %cst_14 = arith.constant dense<0.000000e+00> : vector<2x8x8xf32>
    %39 = tpu.matmul %38, %26, %cst_14 {dimension_numbers = #tpu.dot_dimension_numbers<[2], [1], [1], [2], [0, 0, 0, 1, 1, 2], [0], [0]>} : vector<2x8x8xf32>, vector<2x8x8xf32>, vector<2x8x8xf32> -> vector<2x8x8xf32>
    "tpu.trace_stop"() : () -> ()
    %40 = vector.shape_cast %39 : vector<2x8x8xf32> to vector<16x8xf32>
    %41 = vector.extract_strided_slice %10 {offsets = [0, 8], sizes = [16, 8], strides = [1, 1]} : vector<16x32xf32> to vector<16x8xf32>
    %42 = vector.shape_cast %41 : vector<16x8xf32> to vector<2x8x8xf32>
    %43 = vector.extract_strided_slice %16 {offsets = [0, 8], sizes = [16, 8], strides = [1, 1]} : vector<16x32xf32> to vector<16x8xf32>
    %44 = vector.shape_cast %43 : vector<16x8xf32> to vector<2x8x8xf32>
    %45 = vector.extract_strided_slice %20 {offsets = [0, 8], sizes = [16, 8], strides = [1, 1]} : vector<16x32xf32> to vector<16x8xf32>
    %46 = vector.shape_cast %45 : vector<16x8xf32> to vector<2x8x8xf32>
    "tpu.trace_start"() <{level = 10 : i32, message = "bqd,bkd->bqk"}> : () -> ()
    %cst_15 = arith.constant dense<0.000000e+00> : vector<2x8x8xf32>
    %47 = tpu.matmul %42, %44, %cst_15 {dimension_numbers = #tpu.dot_dimension_numbers<[2], [2], [1], [1], [0, 0, 0, 1, 1, 1], [0], [0]>} : vector<2x8x8xf32>, vector<2x8x8xf32>, vector<2x8x8xf32> -> vector<2x8x8xf32>
    "tpu.trace_stop"() : () -> ()
    %cst_16 = arith.constant 0.353553385 : f32
    %48 = vector.broadcast %cst_16 : f32 to vector<2x8x8xf32>
    %49 = arith.mulf %47, %48 : vector<2x8x8xf32>
    %cst_17 = arith.constant dense<0xFF800000> : vector<2x8xf32>
    %50 = vector.multi_reduction <maximumf>, %49, %cst_17 [2] : vector<2x8x8xf32> to vector<2x8xf32>
    %51 = vector.shape_cast %50 : vector<2x8xf32> to vector<2x8x1xf32>
    %52 = vector.broadcast %51 : vector<2x8x1xf32> to vector<2x8x8xf32>
    %53 = arith.subf %49, %52 : vector<2x8x8xf32>
    %54 = math.exp %53 : vector<2x8x8xf32>
    %cst_18 = arith.constant dense<0.000000e+00> : vector<2x8xf32>
    %55 = vector.multi_reduction <add>, %54, %cst_18 [2] : vector<2x8x8xf32> to vector<2x8xf32>
    %56 = vector.shape_cast %55 : vector<2x8xf32> to vector<2x8x1xf32>
    %57 = vector.broadcast %56 : vector<2x8x1xf32> to vector<2x8x8xf32>
    %58 = arith.divf %54, %57 : vector<2x8x8xf32>
    "tpu.trace_start"() <{level = 10 : i32, message = "bqk,bkd->bqd"}> : () -> ()
    %cst_19 = arith.constant dense<0.000000e+00> : vector<2x8x8xf32>
    %59 = tpu.matmul %58, %46, %cst_19 {dimension_numbers = #tpu.dot_dimension_numbers<[2], [1], [1], [2], [0, 0, 0, 1, 1, 2], [0], [0]>} : vector<2x8x8xf32>, vector<2x8x8xf32>, vector<2x8x8xf32> -> vector<2x8x8xf32>
    "tpu.trace_stop"() : () -> ()
    %60 = vector.shape_cast %59 : vector<2x8x8xf32> to vector<16x8xf32>
    %61 = vector.extract_strided_slice %10 {offsets = [0, 16], sizes = [16, 8], strides = [1, 1]} : vector<16x32xf32> to vector<16x8xf32>
    %62 = vector.shape_cast %61 : vector<16x8xf32> to vector<2x8x8xf32>
    %63 = vector.extract_strided_slice %16 {offsets = [0, 16], sizes = [16, 8], strides = [1, 1]} : vector<16x32xf32> to vector<16x8xf32>
    %64 = vector.shape_cast %63 : vector<16x8xf32> to vector<2x8x8xf32>
    %65 = vector.extract_strided_slice %20 {offsets = [0, 16], sizes = [16, 8], strides = [1, 1]} : vector<16x32xf32> to vector<16x8xf32>
    %66 = vector.shape_cast %65 : vector<16x8xf32> to vector<2x8x8xf32>
    "tpu.trace_start"() <{level = 10 : i32, message = "bqd,bkd->bqk"}> : () -> ()
    %cst_20 = arith.constant dense<0.000000e+00> : vector<2x8x8xf32>
    %67 = tpu.matmul %62, %64, %cst_20 {dimension_numbers = #tpu.dot_dimension_numbers<[2], [2], [1], [1], [0, 0, 0, 1, 1, 1], [0], [0]>} : vector<2x8x8xf32>, vector<2x8x8xf32>, vector<2x8x8xf32> -> vector<2x8x8xf32>
    "tpu.trace_stop"() : () -> ()
    %cst_21 = arith.constant 0.353553385 : f32
    %68 = vector.broadcast %cst_21 : f32 to vector<2x8x8xf32>
    %69 = arith.mulf %67, %68 : vector<2x8x8xf32>
    %cst_22 = arith.constant dense<0xFF800000> : vector<2x8xf32>
    %70 = vector.multi_reduction <maximumf>, %69, %cst_22 [2] : vector<2x8x8xf32> to vector<2x8xf32>
    %71 = vector.shape_cast %70 : vector<2x8xf32> to vector<2x8x1xf32>
    %72 = vector.broadcast %71 : vector<2x8x1xf32> to vector<2x8x8xf32>
    %73 = arith.subf %69, %72 : vector<2x8x8xf32>
    %74 = math.exp %73 : vector<2x8x8xf32>
    %cst_23 = arith.constant dense<0.000000e+00> : vector<2x8xf32>
    %75 = vector.multi_reduction <add>, %74, %cst_23 [2] : vector<2x8x8xf32> to vector<2x8xf32>
    %76 = vector.shape_cast %75 : vector<2x8xf32> to vector<2x8x1xf32>
    %77 = vector.broadcast %76 : vector<2x8x1xf32> to vector<2x8x8xf32>
    %78 = arith.divf %74, %77 : vector<2x8x8xf32>
    "tpu.trace_start"() <{level = 10 : i32, message = "bqk,bkd->bqd"}> : () -> ()
    %cst_24 = arith.constant dense<0.000000e+00> : vector<2x8x8xf32>
    %79 = tpu.matmul %78, %66, %cst_24 {dimension_numbers = #tpu.dot_dimension_numbers<[2], [1], [1], [2], [0, 0, 0, 1, 1, 2], [0], [0]>} : vector<2x8x8xf32>, vector<2x8x8xf32>, vector<2x8x8xf32> -> vector<2x8x8xf32>
    "tpu.trace_stop"() : () -> ()
    %80 = vector.shape_cast %79 : vector<2x8x8xf32> to vector<16x8xf32>
    %81 = vector.extract_strided_slice %10 {offsets = [0, 24], sizes = [16, 8], strides = [1, 1]} : vector<16x32xf32> to vector<16x8xf32>
    %82 = vector.shape_cast %81 : vector<16x8xf32> to vector<2x8x8xf32>
    %83 = vector.extract_strided_slice %16 {offsets = [0, 24], sizes = [16, 8], strides = [1, 1]} : vector<16x32xf32> to vector<16x8xf32>
    %84 = vector.shape_cast %83 : vector<16x8xf32> to vector<2x8x8xf32>
    %85 = vector.extract_strided_slice %20 {offsets = [0, 24], sizes = [16, 8], strides = [1, 1]} : vector<16x32xf32> to vector<16x8xf32>
    %86 = vector.shape_cast %85 : vector<16x8xf32> to vector<2x8x8xf32>
    "tpu.trace_start"() <{level = 10 : i32, message = "bqd,bkd->bqk"}> : () -> ()
    %cst_25 = arith.constant dense<0.000000e+00> : vector<2x8x8xf32>
    %87 = tpu.matmul %82, %84, %cst_25 {dimension_numbers = #tpu.dot_dimension_numbers<[2], [2], [1], [1], [0, 0, 0, 1, 1, 1], [0], [0]>} : vector<2x8x8xf32>, vector<2x8x8xf32>, vector<2x8x8xf32> -> vector<2x8x8xf32>
    "tpu.trace_stop"() : () -> ()
    %cst_26 = arith.constant 0.353553385 : f32
    %88 = vector.broadcast %cst_26 : f32 to vector<2x8x8xf32>
    %89 = arith.mulf %87, %88 : vector<2x8x8xf32>
    %cst_27 = arith.constant dense<0xFF800000> : vector<2x8xf32>
    %90 = vector.multi_reduction <maximumf>, %89, %cst_27 [2] : vector<2x8x8xf32> to vector<2x8xf32>
    %91 = vector.shape_cast %90 : vector<2x8xf32> to vector<2x8x1xf32>
    %92 = vector.broadcast %91 : vector<2x8x1xf32> to vector<2x8x8xf32>
    %93 = arith.subf %89, %92 : vector<2x8x8xf32>
    %94 = math.exp %93 : vector<2x8x8xf32>
    %cst_28 = arith.constant dense<0.000000e+00> : vector<2x8xf32>
    %95 = vector.multi_reduction <add>, %94, %cst_28 [2] : vector<2x8x8xf32> to vector<2x8xf32>
    %96 = vector.shape_cast %95 : vector<2x8xf32> to vector<2x8x1xf32>
    %97 = vector.broadcast %96 : vector<2x8x1xf32> to vector<2x8x8xf32>
    %98 = arith.divf %94, %97 : vector<2x8x8xf32>
    "tpu.trace_start"() <{level = 10 : i32, message = "bqk,bkd->bqd"}> : () -> ()
    %cst_29 = arith.constant dense<0.000000e+00> : vector<2x8x8xf32>
    %99 = tpu.matmul %98, %86, %cst_29 {dimension_numbers = #tpu.dot_dimension_numbers<[2], [1], [1], [2], [0, 0, 0, 1, 1, 2], [0], [0]>} : vector<2x8x8xf32>, vector<2x8x8xf32>, vector<2x8x8xf32> -> vector<2x8x8xf32>
    "tpu.trace_stop"() : () -> ()
    %100 = vector.shape_cast %99 : vector<2x8x8xf32> to vector<16x8xf32>
    %101 = tpu.concatenate %40, %60, %80, %100 in 1 : vector<16x8xf32>, vector<16x8xf32>, vector<16x8xf32>, vector<16x8xf32> -> vector<16x32xf32>
    %102 = vector.extract_strided_slice %2 {offsets = [0, 96], sizes = [32, 32], strides = [1, 1]} : vector<32x128xf32> to vector<32x32xf32>
    %cst_30 = arith.constant dense<0.000000e+00> : vector<16x32xf32>
    %103 = tpu.matmul %101, %102, %cst_30 {dimension_numbers = #tpu.dot_dimension_numbers<[1], [0], [0], [1], [0, 0, 1, 1], [], []>} : vector<16x32xf32>, vector<32x32xf32>, vector<16x32xf32> -> vector<16x32xf32>
    %104 = vector.extract_strided_slice %3 {offsets = [3, 0], sizes = [1, 32], strides = [1, 1]} : vector<6x32xf32> to vector<1x32xf32>
    %105 = vector.broadcast %104 : vector<1x32xf32> to vector<16x32xf32>
    %106 = arith.addf %103, %105 : vector<16x32xf32>
    %107 = vector.shape_cast %106 : vector<16x32xf32> to vector<2x8x32xf32>
    %108 = arith.addf %0, %107 : vector<2x8x32xf32>
    %cst_31 = arith.constant dense<0.000000e+00> : vector<2x8xf32>
    %109 = vector.multi_reduction <add>, %108, %cst_31 [2] : vector<2x8x32xf32> to vector<2x8xf32>
    %110 = vector.shape_cast %109 : vector<2x8xf32> to vector<2x8x1xf32>
    %cst_32 = arith.constant 3.200000e+01 : f32
    %111 = vector.broadcast %cst_32 : f32 to vector<2x8x1xf32>
    %112 = arith.divf %110, %111 : vector<2x8x1xf32>
    %113 = vector.broadcast %112 : vector<2x8x1xf32> to vector<2x8x32xf32>
    %114 = arith.subf %108, %113 : vector<2x8x32xf32>
    %115 = arith.mulf %114, %114 : vector<2x8x32xf32>
    %cst_33 = arith.constant dense<0.000000e+00> : vector<2x8xf32>
    %116 = vector.multi_reduction <add>, %115, %cst_33 [2] : vector<2x8x32xf32> to vector<2x8xf32>
    %117 = vector.shape_cast %116 : vector<2x8xf32> to vector<2x8x1xf32>
    %cst_34 = arith.constant 3.200000e+01 : f32
    %118 = vector.broadcast %cst_34 : f32 to vector<2x8x1xf32>
    %119 = arith.divf %117, %118 : vector<2x8x1xf32>
    %120 = vector.broadcast %112 : vector<2x8x1xf32> to vector<2x8x32xf32>
    %121 = arith.subf %108, %120 : vector<2x8x32xf32>
    %cst_35 = arith.constant 9.99999996E-13 : f32
    %122 = vector.broadcast %cst_35 : f32 to vector<2x8x1xf32>
    %123 = arith.addf %119, %122 : vector<2x8x1xf32>
    %124 = math.rsqrt %123 : vector<2x8x1xf32>
    %125 = vector.broadcast %124 : vector<2x8x1xf32> to vector<2x8x32xf32>
    %126 = arith.mulf %121, %125 : vector<2x8x32xf32>
    %127 = vector.extract_strided_slice %3 {offsets = [4, 0], sizes = [1, 32], strides = [1, 1]} : vector<6x32xf32> to vector<1x32xf32>
    %128 = vector.shape_cast %127 : vector<1x32xf32> to vector<1x1x32xf32>
    %129 = vector.broadcast %128 : vector<1x1x32xf32> to vector<2x8x32xf32>
    %130 = arith.mulf %126, %129 : vector<2x8x32xf32>
    %131 = vector.extract_strided_slice %3 {offsets = [5, 0], sizes = [1, 32], strides = [1, 1]} : vector<6x32xf32> to vector<1x32xf32>
    %132 = vector.shape_cast %131 : vector<1x32xf32> to vector<1x1x32xf32>
    %133 = vector.broadcast %132 : vector<1x1x32xf32> to vector<2x8x32xf32>
    %134 = arith.addf %130, %133 : vector<2x8x32xf32>
    %c0_36 = arith.constant 0 : index
    %c0_37 = arith.constant 0 : index
    %c0_38 = arith.constant 0 : index
    %135 = vector.load %arg5[%c0_36, %c0_37, %c0_38] : memref<2x8x32xf32, #tpu.memory_space<vmem>>, vector<2x8x32xf32>
    tpu.vector_store %arg5[%c0_36, %c0_37, %c0_38], %134 {strides = array<i32>} : memref<2x8x32xf32, #tpu.memory_space<vmem>>, vector<2x8x32xf32>,
    return
  }
  func.func @transform_0(%arg0: i32) -> (i32, i32, i32) {
    %c0_i32 = arith.constant 0 : i32
    %c0_i32_0 = arith.constant 0 : i32
    %c0_i32_1 = arith.constant 0 : i32
    return %arg0, %c0_i32, %c0_i32_0 : i32, i32, i32
  }
  func.func @transform_1(%arg0: i32) -> (i32, i32, i32) {
    %c0_i32 = arith.constant 0 : i32
    %c0_i32_0 = arith.constant 0 : i32
    %c0_i32_1 = arith.constant 0 : i32
    return %arg0, %c0_i32, %c0_i32_0 : i32, i32, i32
  }
  func.func @transform_2(%arg0: i32) -> (i32, i32) {
    %c0_i32 = arith.constant 0 : i32
    %c0_i32_0 = arith.constant 0 : i32
    %c0_i32_1 = arith.constant 0 : i32
    return %c0_i32, %c0_i32_0 : i32, i32
  }
  func.func @transform_3(%arg0: i32) -> (i32, i32) {
    %c0_i32 = arith.constant 0 : i32
    %c0_i32_0 = arith.constant 0 : i32
    %c0_i32_1 = arith.constant 0 : i32
    return %c0_i32, %c0_i32_0 : i32, i32
  }
  func.func @transform_4(%arg0: i32) -> (i32, i32, i32) {
    %c0_i32 = arith.constant 0 : i32
    %c0_i32_0 = arith.constant 0 : i32
    %c0_i32_1 = arith.constant 0 : i32
    return %arg0, %c0_i32, %c0_i32_0 : i32, i32, i32
  }
}

</mosaic_0001>

<llo_original>
// kernel: tpu_custom_call.1
$region0: #{tpu_custom_call.1}
  #allocation0 [shape = 'u32[]', space=smem, size = 0x4, offset = 0x4, fixed_abs, tag = 'smem constant byte address 0x4 - core index']
  #allocation1 [shape = 'u32[144,128]{1,0:T(1,128)}', space=vmem, size = 0x12000, scoped, tag = 'internal scratch']
  %s0 = inlined_call_operand.hbm [shape: f32[2,8,32], index: 0, kind: input, shape index: {}]
  %s1 = inlined_call_operand.hbm [shape: f32[2,8,32], index: 1, kind: input, shape index: {}]
  %s2 = inlined_call_operand.hbm [shape: f32[32,128], index: 2, kind: input, shape index: {}]
  %s3 = inlined_call_operand.vmem [shape: f32[6,32], index: 3, kind: input, shape index: {}]
  %s4 = inlined_call_operand.hbm [shape: f32[2,8,32], index: 4, kind: output, shape index: {}]
  %s5 = sld [smem:[#allocation0]]
  $region38: #{tpu_custom_call.1} parent=0
    _
  %s7 = ssub.s32 1, %s5
  %s8 = scalar_select 0, %s7, %s5
  $region1: #{tpu_custom_call.1} parent=0
    #allocation2 [shape = 'u8[8192]{0}', space=vmem, size = 0x2000, scoped, tag = 'input window, operand 0, single buffered']
    #allocation3 [shape = 's32[1]{0}', space=sflag, size = 0x4, scoped, tag = 'scoped memory for tpu_custom_call.1']
    #allocation4 [shape = 's32[1]{0}', space=sflag, size = 0x4, scoped, tag = 'scoped memory for tpu_custom_call.1']
    #allocation5 [shape = 'u8[8192]{0}', space=vmem, size = 0x2000, scoped, tag = 'input window, operand 1, single buffered']
    #allocation6 [shape = 's32[1]{0}', space=sflag, size = 0x4, scoped, tag = 'scoped memory for tpu_custom_call.1']
    #allocation7 [shape = 'u8[16384]{0}', space=vmem, size = 0x4000, scoped, tag = 'input window, operand 2, single buffered']
    #allocation8 [shape = 'u8[8192]{0}', space=vmem, size = 0x2000, scoped, tag = 'output window, operand 0, single buffered']
    %9 = vsyncpa [#allocation3], 0
    %10 = vsyncpa [#allocation6], 0
    %11 = vsyncpa [#allocation4], 0
    // Predicated region
    $region2: #{tpu_custom_call.1} parent=1 // pred_check
      _
    $region3: #{tpu_custom_call.1} parent=1 // pred_check_branch
      %13 = sbr.rel (0) target = $region5
    $region4: #{tpu_custom_call.1} parent=1 // pred_region
      %s15 = ssub.s32 256, 256
      %16 = vsyncadd [#allocation3], %s15
      %s17 = sshll.u32 [#allocation2], 4
      %s18 = int_to_ptr.vmem [resolvable:$true] %s17
      %23 = dma.hbm_to_vmem [thread:$0]  %s0, 256, %s18, [#allocation3], 128, 128, 8
    $region5: #{tpu_custom_call.1} parent=1 // pred_fallthru
      _
    // Predicated region
    $region6: #{tpu_custom_call.1} parent=1 // pred_check
      _
    $region7: #{tpu_custom_call.1} parent=1 // pred_check_branch
      %25 = sbr.rel (0) target = $region9
    $region8: #{tpu_custom_call.1} parent=1 // pred_region
      %s27 = ssub.s32 256, 256
      %28 = vsyncadd [#allocation6], %s27
      %s29 = sshll.u32 [#allocation5], 4
      %s30 = int_to_ptr.vmem [resolvable:$true] %s29
      %35 = dma.hbm_to_vmem [thread:$0]  %s1, 256, %s30, [#allocation6], 128, 128, 8
    $region9: #{tpu_custom_call.1} parent=1 // pred_fallthru
      _
    // Predicated region
    $region10: #{tpu_custom_call.1} parent=1 // pred_check
      _
    $region11: #{tpu_custom_call.1} parent=1 // pred_check_branch
      %37 = sbr.rel (0) target = $region13
    $region12: #{tpu_custom_call.1} parent=1 // pred_region
      %s39 = ssub.s32 512, 512
      %40 = vsyncadd [#allocation6], %s39
      %s41 = sshll.u32 [#allocation7], 4
      %s42 = int_to_ptr.vmem [resolvable:$true] %s41
      %47 = dma.hbm_to_vmem [thread:$0]  %s2, 512, %s42, [#allocation6], 128, 128, 8
    $region13: #{tpu_custom_call.1} parent=1 // pred_fallthru
      _
    // Predicated region
    $region14: #{tpu_custom_call.1} parent=1 // pred_check
      _
    $region15: #{tpu_custom_call.1} parent=1 // pred_check_branch
      %49 = sbr.rel (0) target = $region17
    $region16: #{tpu_custom_call.1} parent=1 // pred_region
      _
    $region17: #{tpu_custom_call.1} parent=1 // pred_fallthru
      _
    // Predicated region
    $region18: #{tpu_custom_call.1} parent=1 // pred_check
      _
    $region19: #{tpu_custom_call.1} parent=1 // pred_check_branch
      %51 = sbr.rel (0) target = $region21
    $region20: #{tpu_custom_call.1} parent=1 // pred_region
      %52 = dma.done [#allocation3], 256
    $region21: #{tpu_custom_call.1} parent=1 // pred_fallthru
      _
    // Predicated region
    $region22: #{tpu_custom_call.1} parent=1 // pred_check
      _
    $region23: #{tpu_custom_call.1} parent=1 // pred_check_branch
      %54 = sbr.rel (0) target = $region25
    $region24: #{tpu_custom_call.1} parent=1 // pred_region
      %55 = dma.done [#allocation6], 256
    $region25: #{tpu_custom_call.1} parent=1 // pred_fallthru
      _
    // Predicated region
    $region26: #{tpu_custom_call.1} parent=1 // pred_check
      _
    $region27: #{tpu_custom_call.1} parent=1 // pred_check_branch
      %57 = sbr.rel (0) target = $region29
    $region28: #{tpu_custom_call.1} parent=1 // pred_region
      %58 = dma.done [#allocation6], 512
    $region29: #{tpu_custom_call.1} parent=1 // pred_fallthru
      _
    %v59 = vld [vmem:[#allocation2] sm:$0xff]
    %v60 = vld [vmem:[#allocation2 + $0x8] sm:$0xff]
    %v61 = vld [vmem:[#allocation5] sm:$0xff]
    %v62 = vld [vmem:[#allocation5 + $0x8] sm:$0xff]
    %v63 = vld [vmem:[#allocation7] sm:$0xff]
    %v64 = vld [vmem:[#allocation7 + $0x8] sm:$0xff]
    %v65 = vld [vmem:[#allocation7 + $0x10] sm:$0xff]
    %v66 = vld [vmem:[#allocation7 + $0x18] sm:$0xff]
    %v67 = vld [vmem:[%s3] sm:$0x3f]
    %v68 = vlaneseq
    %v69 = vshrl.u32 %v68, 7
    %v70 = vsub.s32 0, %v69
    %v71 = vrot.slane %v67, %v70
    %vm72 = vcmask 261120
    %v74 = vsel %vm72, %v59, 0
    %v77 = vsel %vm72, %v60, 0
    %79 = vmatprep.subr.mxu0 0.0
    %80 = vmatpush1.msra.mxu0 %v63
    %81 = vmatprep.subr.mxu0 0.0
    %82 = vmatpush1.msra.mxu0 %v64
    %83 = vmatprep.subr.mxu0 0.0
    %84 = vmatpush1.msra.mxu0 %v65
    %85 = vmatprep.subr.mxu0 0.0
    %86 = vmatpush1.msra.mxu0 %v66
    %87 = vmatprep.subr.mxu0 0.0
    %88 = vmatpush1.msra.mxu0 0.0
    %89 = vmatprep.subr.mxu0 0.0
    %90 = vmatpush1.msra.mxu0 0.0
    %91 = vmatprep.subr.mxu0 0.0
    %92 = vmatpush1.msra.mxu0 0.0
    %93 = vmatprep.subr.mxu0 0.0
    %94 = vmatpush1.msra.mxu0 0.0
    %95 = vmatprep.subr.mxu0 0.0
    %96 = vmatpush1.msra.mxu0 0.0
    %97 = vmatprep.subr.mxu0 0.0
    %98 = vmatpush1.msra.mxu0 0.0
    %99 = vmatprep.subr.mxu0 0.0
    %100 = vmatpush1.msra.mxu0 0.0
    %101 = vmatprep.subr.mxu0 0.0
    %102 = vmatpush1.msra.mxu0 0.0
    %103 = vmatprep.subr.mxu0 0.0
    %104 = vmatpush1.msra.mxu0 0.0
    %105 = vmatprep.subr.mxu0 0.0
    %106 = vmatpush1.msra.mxu0 0.0
    %107 = vmatprep.subr.mxu0 0.0
    %108 = vmatpush1.msra.mxu0 0.0
    %109 = vmatprep.subr.mxu0 0.0
    %110 = vmatpush1.msra.mxu0 0.0
    %111 = vmatprep.subr.mxu0 0.0
    %112 = vmatpush1.msra.mxu0 0.0
    %113 = vmatprep.subr.mxu0 0.0
    %114 = vmatpush1.msra.mxu0 0.0
    %115 = vmatprep.subr.mxu0 0.0
    %116 = vmatpush1.msra.mxu0 0.0
    %117 = vmatprep.subr.mxu0 0.0
    %118 = vmatpush1.msra.mxu0 0.0
    %119 = vmatprep.subr.mxu0 0.0
    %120 = vmatpush1.msra.mxu0 0.0
    %121 = vmatprep.subr.mxu0 0.0
    %122 = vmatpush1.msra.mxu0 0.0
    %123 = vmatprep.subr.mxu0 0.0
    %124 = vmatpush1.msra.mxu0 0.0
    %125 = vmatprep.subr.mxu0 0.0
    %126 = vmatpush1.msra.mxu0 0.0
    %127 = vmatprep.subr.mxu0 0.0
    %128 = vmatpush1.msra.mxu0 0.0
    %129 = vmatprep.subr.mxu0 0.0
    %130 = vmatpush1.msra.mxu0 0.0
    %131 = vmatprep.subr.mxu0 0.0
    %132 = vmatpush1.msra.mxu0 0.0
    %133 = vmatprep.subr.mxu0 0.0
    %134 = vmatpush1.msra.mxu0 0.0
    %135 = vmatprep.subr.mxu0 0.0
    %136 = vmatpush1.msra.mxu0 0.0
    %137 = vmatprep.subr.mxu0 0.0
    %138 = vmatpush1.msra.mxu0 0.0
    %139 = vmatprep.subr.mxu0 0.0
    %140 = vmatpush1.msra.mxu0 0.0
    %141 = vmatprep.subr.mxu0 0.0
    %142 = vmatpush1.msra.mxu0 0.0
    %143 = vmatprep.mubr.f32.mxu0 0.0
    %144 = vmatmul.mubr.f32.gmra.mrb[0].mxu0 %v74
    %v145 = vpop.f32.mrb[0].mxu0
    %v146 = vadd.f32 %v71, %v145
    %v147 = vpop.f32.mrb[0].mxu0
    %148 = vmatprep.mubr.f32.mxu0 0.0
    %149 = vmatmul.mubr.f32.gmra.mrb[0].mxu0 %v77
    %v150 = vpop.f32.mrb[0].mxu0
    %v151 = vadd.f32 %v71, %v150
    %v152 = vpop.f32.mrb[0].mxu0
    %153 = vdwg.mxu0
    %158 = vrot.lane.b32.xlu0 %v63, 96
    %v159 = vpop.permute.xlu0 %158
    %160 = vrot.lane.b32.xlu0 %v64, 96
    %v161 = vpop.permute.xlu0 %160
    %162 = vrot.lane.b32.xlu0 %v65, 96
    %v163 = vpop.permute.xlu0 %162
    %164 = vrot.lane.b32.xlu0 %v66, 96
    %v165 = vpop.permute.xlu0 %164
    %v171 = vsel %vm72, %v61, 0
    %v174 = vsel %vm72, %v62, 0
    %176 = vmatprep.subr.mxu0 0.0
    %177 = vmatpush1.msra.mxu0 %v159
    %178 = vmatprep.subr.mxu0 0.0
    %179 = vmatpush1.msra.mxu0 %v161
    %180 = vmatprep.subr.mxu0 0.0
    %181 = vmatpush1.msra.mxu0 %v163
    %182 = vmatprep.subr.mxu0 0.0
    %183 = vmatpush1.msra.mxu0 %v165
    %184 = vmatprep.subr.mxu0 0.0
    %185 = vmatpush1.msra.mxu0 0.0
    %186 = vmatprep.subr.mxu0 0.0
    %187 = vmatpush1.msra.mxu0 0.0
    %188 = vmatprep.subr.mxu0 0.0
    %189 = vmatpush1.msra.mxu0 0.0
    %190 = vmatprep.subr.mxu0 0.0
    %191 = vmatpush1.msra.mxu0 0.0
    %192 = vmatprep.subr.mxu0 0.0
    %193 = vmatpush1.msra.mxu0 0.0
    %194 = vmatprep.subr.mxu0 0.0
    %195 = vmatpush1.msra.mxu0 0.0
    %196 = vmatprep.subr.mxu0 0.0
    %197 = vmatpush1.msra.mxu0 0.0
    %198 = vmatprep.subr.mxu0 0.0
    %199 = vmatpush1.msra.mxu0 0.0
    %200 = vmatprep.subr.mxu0 0.0
    %201 = vmatpush1.msra.mxu0 0.0
    %202 = vmatprep.subr.mxu0 0.0
    %203 = vmatpush1.msra.mxu0 0.0
    %204 = vmatprep.subr.mxu0 0.0
    %205 = vmatpush1.msra.mxu0 0.0
    %206 = vmatprep.subr.mxu0 0.0
    %207 = vmatpush1.msra.mxu0 0.0
    %208 = vmatprep.subr.mxu0 0.0
    %209 = vmatpush1.msra.mxu0 0.0
    %210 = vmatprep.subr.mxu0 0.0
    %211 = vmatpush1.msra.mxu0 0.0
    %212 = vmatprep.subr.mxu0 0.0
    %213 = vmatpush1.msra.mxu0 0.0
    %214 = vmatprep.subr.mxu0 0.0
    %215 = vmatpush1.msra.mxu0 0.0
    %216 = vmatprep.subr.mxu0 0.0
    %217 = vmatpush1.msra.mxu0 0.0
    %218 = vmatprep.subr.mxu0 0.0
    %219 = vmatpush1.msra.mxu0 0.0
    %220 = vmatprep.subr.mxu0 0.0
    %221 = vmatpush1.msra.mxu0 0.0
    %222 = vmatprep.subr.mxu0 0.0
    %223 = vmatpush1.msra.mxu0 0.0
    %224 = vmatprep.subr.mxu0 0.0
    %225 = vmatpush1.msra.mxu0 0.0
    %226 = vmatprep.subr.mxu0 0.0
    %227 = vmatpush1.msra.mxu0 0.0
    %228 = vmatprep.subr.mxu0 0.0
    %229 = vmatpush1.msra.mxu0 0.0
    %230 = vmatprep.subr.mxu0 0.0
    %231 = vmatpush1.msra.mxu0 0.0
    %232 = vmatprep.subr.mxu0 0.0
    %233 = vmatpush1.msra.mxu0 0.0
    %234 = vmatprep.subr.mxu0 0.0
    %235 = vmatpush1.msra.mxu0 0.0
    %236 = vmatprep.subr.mxu0 0.0
    %237 = vmatpush1.msra.mxu0 0.0
    %238 = vmatprep.subr.mxu0 0.0
    %239 = vmatpush1.msra.mxu0 0.0
    %240 = vmatprep.mubr.f32.mxu0 0.0
    %241 = vmatmul.mubr.f32.gmra.mrb[0].mxu0 %v171
    %v242 = vpop.f32.mrb[0].mxu0
    %v243 = vadd.f32 0.0, %v242
    %v244 = vpop.f32.mrb[0].mxu0
    %245 = vmatprep.mubr.f32.mxu0 0.0
    %246 = vmatmul.mubr.f32.gmra.mrb[0].mxu0 %v174
    %v247 = vpop.f32.mrb[0].mxu0
    %v248 = vadd.f32 0.0, %v247
    %v249 = vpop.f32.mrb[0].mxu0
    %250 = vdwg.mxu0
    %v251 = vlaneseq
    %v252 = vshrl.u32 %v251, 7
    %v253 = vsub.s32 1, %v252
    %v254 = vrot.slane %v67, %v253
    %v255 = vadd.f32 %v243, %v254
    %v256 = vadd.f32 %v248, %v254
    %v257 = vlaneseq
    %v258 = vshrl.u32 %v257, 7
    %v259 = vsub.s32 2, %v258
    %v260 = vrot.slane %v67, %v259
    %262 = vrot.lane.b32.xlu0 %v260, 32
    %v263 = vpop.permute.xlu0 %262
    %v265 = vadd.f32 %v243, %v263
    %v266 = vadd.f32 %v248, %v263
    %vm267 = vcmask 64512
    %v269 = vsel %vm267, %v146, 0
    %v272 = vsel %vm267, %v255, 0
    %274 = vmatprep.subr.mxu0 0.0
    %275 = vmatpush1.xpose.msra.mxu0 %v272
    %276 = vmatprep.subr.mxu0 0.0
    %277 = vmatpush1.xpose.msra.mxu0 0.0
    %278 = vmatprep.subr.mxu0 0.0
    %279 = vmatpush1.xpose.msra.mxu0 0.0
    %280 = vmatprep.subr.mxu0 0.0
    %281 = vmatpush1.xpose.msra.mxu0 0.0
    %282 = vmatprep.subr.mxu0 0.0
    %283 = vmatpush1.xpose.msra.mxu0 0.0
    %284 = vmatprep.subr.mxu0 0.0
    %285 = vmatpush1.xpose.msra.mxu0 0.0
    %286 = vmatprep.subr.mxu0 0.0
    %287 = vmatpush1.xpose.msra.mxu0 0.0
    %288 = vmatprep.subr.mxu0 0.0
    %289 = vmatpush1.xpose.msra.mxu0 0.0
    %290 = vmatprep.subr.mxu0 0.0
    %291 = vmatpush1.xpose.msra.mxu0 0.0
    %292 = vmatprep.subr.mxu0 0.0
    %293 = vmatpush1.xpose.msra.mxu0 0.0
    %294 = vmatprep.subr.mxu0 0.0
    %295 = vmatpush1.xpose.msra.mxu0 0.0
    %296 = vmatprep.subr.mxu0 0.0
    %297 = vmatpush1.xpose.msra.mxu0 0.0
    %298 = vmatprep.subr.mxu0 0.0
    %299 = vmatpush1.xpose.msra.mxu0 0.0
    %300 = vmatprep.subr.mxu0 0.0
    %301 = vmatpush1.xpose.msra.mxu0 0.0
    %302 = vmatprep.subr.mxu0 0.0
    %303 = vmatpush1.xpose.msra.mxu0 0.0
    %304 = vmatprep.subr.mxu0 0.0
    %305 = vmatpush1.xpose.msra.mxu0 0.0
    %306 = vmatprep.subr.mxu0 0.0
    %307 = vmatpush1.xpose.msra.mxu0 0.0
    %308 = vmatprep.subr.mxu0 0.0
    %309 = vmatpush1.xpose.msra.mxu0 0.0
    %310 = vmatprep.subr.mxu0 0.0
    %311 = vmatpush1.xpose.msra.mxu0 0.0
    %312 = vmatprep.subr.mxu0 0.0
    %313 = vmatpush1.xpose.msra.mxu0 0.0
    %314 = vmatprep.subr.mxu0 0.0
    %315 = vmatpush1.xpose.msra.mxu0 0.0
    %316 = vmatprep.subr.mxu0 0.0
    %317 = vmatpush1.xpose.msra.mxu0 0.0
    %318 = vmatprep.subr.mxu0 0.0
    %319 = vmatpush1.xpose.msra.mxu0 0.0
    %320 = vmatprep.subr.mxu0 0.0
    %321 = vmatpush1.xpose.msra.mxu0 0.0
    %322 = vmatprep.subr.mxu0 0.0
    %323 = vmatpush1.xpose.msra.mxu0 0.0
    %324 = vmatprep.subr.mxu0 0.0
    %325 = vmatpush1.xpose.msra.mxu0 0.0
    %326 = vmatprep.subr.mxu0 0.0
    %327 = vmatpush1.xpose.msra.mxu0 0.0
    %328 = vmatprep.subr.mxu0 0.0
    %329 = vmatpush1.xpose.msra.mxu0 0.0
    %330 = vmatprep.subr.mxu0 0.0
    %331 = vmatpush1.xpose.msra.mxu0 0.0
    %332 = vmatprep.subr.mxu0 0.0
    %333 = vmatpush1.xpose.msra.mxu0 0.0
    %334 = vmatprep.subr.mxu0 0.0
    %335 = vmatpush1.xpose.msra.mxu0 0.0
    %336 = vmatprep.subr.mxu0 0.0
    %337 = vmatpush1.xpose.msra.mxu0 0.0
    %338 = vmatprep.mubr.f32.mxu0 0.0
    %339 = vmatmul.mubr.f32.gmra.mrb[0].mxu0 %v269
    %v340 = vpop.f32.mrb[0].mxu0
    %v341 = vadd.f32 0.0, %v340
    %v342 = vpop.f32.mrb[0].mxu0
    %343 = vdwg.mxu0
    %v345 = vsel %vm267, %v151, 0
    %v348 = vsel %vm267, %v256, 0
    %350 = vmatprep.subr.mxu0 0.0
    %351 = vmatpush1.xpose.msra.mxu0 %v348
    %352 = vmatprep.subr.mxu0 0.0
    %353 = vmatpush1.xpose.msra.mxu0 0.0
    %354 = vmatprep.subr.mxu0 0.0
    %355 = vmatpush1.xpose.msra.mxu0 0.0
    %356 = vmatprep.subr.mxu0 0.0
    %357 = vmatpush1.xpose.msra.mxu0 0.0
    %358 = vmatprep.subr.mxu0 0.0
    %359 = vmatpush1.xpose.msra.mxu0 0.0
    %360 = vmatprep.subr.mxu0 0.0
    %361 = vmatpush1.xpose.msra.mxu0 0.0
    %362 = vmatprep.subr.mxu0 0.0
    %363 = vmatpush1.xpose.msra.mxu0 0.0
    %364 = vmatprep.subr.mxu0 0.0
    %365 = vmatpush1.xpose.msra.mxu0 0.0
    %366 = vmatprep.subr.mxu0 0.0
    %367 = vmatpush1.xpose.msra.mxu0 0.0
    %368 = vmatprep.subr.mxu0 0.0
    %369 = vmatpush1.xpose.msra.mxu0 0.0
    %370 = vmatprep.subr.mxu0 0.0
    %371 = vmatpush1.xpose.msra.mxu0 0.0
    %372 = vmatprep.subr.mxu0 0.0
    %373 = vmatpush1.xpose.msra.mxu0 0.0
    %374 = vmatprep.subr.mxu0 0.0
    %375 = vmatpush1.xpose.msra.mxu0 0.0
    %376 = vmatprep.subr.mxu0 0.0
    %377 = vmatpush1.xpose.msra.mxu0 0.0
    %378 = vmatprep.subr.mxu0 0.0
    %379 = vmatpush1.xpose.msra.mxu0 0.0
    %380 = vmatprep.subr.mxu0 0.0
    %381 = vmatpush1.xpose.msra.mxu0 0.0
    %382 = vmatprep.subr.mxu0 0.0
    %383 = vmatpush1.xpose.msra.mxu0 0.0
    %384 = vmatprep.subr.mxu0 0.0
    %385 = vmatpush1.xpose.msra.mxu0 0.0
    %386 = vmatprep.subr.mxu0 0.0
    %387 = vmatpush1.xpose.msra.mxu0 0.0
    %388 = vmatprep.subr.mxu0 0.0
    %389 = vmatpush1.xpose.msra.mxu0 0.0
    %390 = vmatprep.subr.mxu0 0.0
    %391 = vmatpush1.xpose.msra.mxu0 0.0
    %392 = vmatprep.subr.mxu0 0.0
    %393 = vmatpush1.xpose.msra.mxu0 0.0
    %394 = vmatprep.subr.mxu0 0.0
    %395 = vmatpush1.xpose.msra.mxu0 0.0
    %396 = vmatprep.subr.mxu0 0.0
    %397 = vmatpush1.xpose.msra.mxu0 0.0
    %398 = vmatprep.subr.mxu0 0.0
    %399 = vmatpush1.xpose.msra.mxu0 0.0
    %400 = vmatprep.subr.mxu0 0.0
    %401 = vmatpush1.xpose.msra.mxu0 0.0
    %402 = vmatprep.subr.mxu0 0.0
    %403 = vmatpush1.xpose.msra.mxu0 0.0
    %404 = vmatprep.subr.mxu0 0.0
    %405 = vmatpush1.xpose.msra.mxu0 0.0
    %406 = vmatprep.subr.mxu0 0.0
    %407 = vmatpush1.xpose.msra.mxu0 0.0
    %408 = vmatprep.subr.mxu0 0.0
    %409 = vmatpush1.xpose.msra.mxu0 0.0
    %410 = vmatprep.subr.mxu0 0.0
    %411 = vmatpush1.xpose.msra.mxu0 0.0
    %412 = vmatprep.subr.mxu0 0.0
    %413 = vmatpush1.xpose.msra.mxu0 0.0
    %414 = vmatprep.mubr.f32.mxu0 0.0
    %415 = vmatmul.mubr.f32.gmra.mrb[0].mxu0 %v345
    %v416 = vpop.f32.mrb[0].mxu0
    %v417 = vadd.f32 0.0, %v416
    %v418 = vpop.f32.mrb[0].mxu0
    %419 = vdwg.mxu0
    %v420 = vmul.f32 %v341, 0.35355338
    %v421 = vmul.f32 %v417, 0.35355338
    %v422 = vsel %vm267, %v420, -inf
    %423 = vmax.xlane.f32.xlu0 %v422
    %v424 = vpop.xlane.xlu0 %423
    %v425 = vsel %vm267, %v421, -inf
    %426 = vmax.xlane.f32.xlu0 %v425
    %v427 = vpop.xlane.xlu0 %426
    %v428 = vsub.f32 %v420, %v424
    %v429 = vsub.f32 %v421, %v427
    %v430 = vmul.f32 %v428, 1.442695
    %v431 = vpow.pop %v430
    %v432 = vmul.f32 %v429, 1.442695
    %v433 = vpow.pop %v432
    %v434 = vsel %vm267, %v431, 0.0
    %435 = vadd.xlane.f32.xlu0 %v434
    %v436 = vpop.xlane.xlu0 %435
    %v437 = vsel %vm267, %v433, 0.0
    %438 = vadd.xlane.f32.xlu0 %v437
    %v439 = vpop.xlane.xlu0 %438
    %v440 = vrcp.pop %v436
    %v441 = vmul.f32 %v431, %v440
    %v442 = vrcp.pop %v439
    %v443 = vmul.f32 %v433, %v442
    %445 = vrot.lane.b32.xlu0 %v265, 96
    %v446 = vpop.permute.xlu0 %445
    %v449 = vsel %vm267, %v441, 0
    %451 = vmatprep.subr.mxu0 0.0
    %452 = vmatpush1.msra.mxu0 %v446
    %453 = vmatprep.subr.mxu0 0.0
    %454 = vmatpush1.msra.mxu0 0.0
    %455 = vmatprep.subr.mxu0 0.0
    %456 = vmatpush1.msra.mxu0 0.0
    %457 = vmatprep.subr.mxu0 0.0
    %458 = vmatpush1.msra.mxu0 0.0
    %459 = vmatprep.subr.mxu0 0.0
    %460 = vmatpush1.msra.mxu0 0.0
    %461 = vmatprep.subr.mxu0 0.0
    %462 = vmatpush1.msra.mxu0 0.0
    %463 = vmatprep.subr.mxu0 0.0
    %464 = vmatpush1.msra.mxu0 0.0
    %465 = vmatprep.subr.mxu0 0.0
    %466 = vmatpush1.msra.mxu0 0.0
    %467 = vmatprep.subr.mxu0 0.0
    %468 = vmatpush1.msra.mxu0 0.0
    %469 = vmatprep.subr.mxu0 0.0
    %470 = vmatpush1.msra.mxu0 0.0
    %471 = vmatprep.subr.mxu0 0.0
    %472 = vmatpush1.msra.mxu0 0.0
    %473 = vmatprep.subr.mxu0 0.0
    %474 = vmatpush1.msra.mxu0 0.0
    %475 = vmatprep.subr.mxu0 0.0
    %476 = vmatpush1.msra.mxu0 0.0
    %477 = vmatprep.subr.mxu0 0.0
    %478 = vmatpush1.msra.mxu0 0.0
    %479 = vmatprep.subr.mxu0 0.0
    %480 = vmatpush1.msra.mxu0 0.0
    %481 = vmatprep.subr.mxu0 0.0
    %482 = vmatpush1.msra.mxu0 0.0
    %483 = vmatprep.subr.mxu0 0.0
    %484 = vmatpush1.msra.mxu0 0.0
    %485 = vmatprep.subr.mxu0 0.0
    %486 = vmatpush1.msra.mxu0 0.0
    %487 = vmatprep.subr.mxu0 0.0
    %488 = vmatpush1.msra.mxu0 0.0
    %489 = vmatprep.subr.mxu0 0.0
    %490 = vmatpush1.msra.mxu0 0.0
    %491 = vmatprep.subr.mxu0 0.0
    %492 = vmatpush1.msra.mxu0 0.0
    %493 = vmatprep.subr.mxu0 0.0
    %494 = vmatpush1.msra.mxu0 0.0
    %495 = vmatprep.subr.mxu0 0.0
    %496 = vmatpush1.msra.mxu0 0.0
    %497 = vmatprep.subr.mxu0 0.0
    %498 = vmatpush1.msra.mxu0 0.0
    %499 = vmatprep.subr.mxu0 0.0
    %500 = vmatpush1.msra.mxu0 0.0
    %501 = vmatprep.subr.mxu0 0.0
    %502 = vmatpush1.msra.mxu0 0.0
    %503 = vmatprep.subr.mxu0 0.0
    %504 = vmatpush1.msra.mxu0 0.0
    %505 = vmatprep.subr.mxu0 0.0
    %506 = vmatpush1.msra.mxu0 0.0
    %507 = vmatprep.subr.mxu0 0.0
    %508 = vmatpush1.msra.mxu0 0.0
    %509 = vmatprep.subr.mxu0 0.0
    %510 = vmatpush1.msra.mxu0 0.0
    %511 = vmatprep.subr.mxu0 0.0
    %512 = vmatpush1.msra.mxu0 0.0
    %513 = vmatprep.subr.mxu0 0.0
    %514 = vmatpush1.msra.mxu0 0.0
    %515 = vmatprep.mubr.f32.mxu0 0.0
    %516 = vmatmul.mubr.f32.gmra.mrb[0].mxu0 %v449
    %v517 = vpop.f32.mrb[0].mxu0
    %v518 = vadd.f32 0.0, %v517
    %v519 = vpop.f32.mrb[0].mxu0
    %520 = vdwg.mxu0
    %522 = vrot.lane.b32.xlu0 %v266, 96
    %v523 = vpop.permute.xlu0 %522
    %v526 = vsel %vm267, %v443, 0
    %528 = vmatprep.subr.mxu0 0.0
    %529 = vmatpush1.msra.mxu0 %v523
    %530 = vmatprep.subr.mxu0 0.0
    %531 = vmatpush1.msra.mxu0 0.0
    %532 = vmatprep.subr.mxu0 0.0
    %533 = vmatpush1.msra.mxu0 0.0
    %534 = vmatprep.subr.mxu0 0.0
    %535 = vmatpush1.msra.mxu0 0.0
    %536 = vmatprep.subr.mxu0 0.0
    %537 = vmatpush1.msra.mxu0 0.0
    %538 = vmatprep.subr.mxu0 0.0
    %539 = vmatpush1.msra.mxu0 0.0
    %540 = vmatprep.subr.mxu0 0.0
    %541 = vmatpush1.msra.mxu0 0.0
    %542 = vmatprep.subr.mxu0 0.0
    %543 = vmatpush1.msra.mxu0 0.0
    %544 = vmatprep.subr.mxu0 0.0
    %545 = vmatpush1.msra.mxu0 0.0
    %546 = vmatprep.subr.mxu0 0.0
    %547 = vmatpush1.msra.mxu0 0.0
    %548 = vmatprep.subr.mxu0 0.0
    %549 = vmatpush1.msra.mxu0 0.0
    %550 = vmatprep.subr.mxu0 0.0
    %551 = vmatpush1.msra.mxu0 0.0
    %552 = vmatprep.subr.mxu0 0.0
    %553 = vmatpush1.msra.mxu0 0.0
    %554 = vmatprep.subr.mxu0 0.0
    %555 = vmatpush1.msra.mxu0 0.0
    %556 = vmatprep.subr.mxu0 0.0
    %557 = vmatpush1.msra.mxu0 0.0
    %558 = vmatprep.subr.mxu0 0.0
    %559 = vmatpush1.msra.mxu0 0.0
    %560 = vmatprep.subr.mxu0 0.0
    %561 = vmatpush1.msra.mxu0 0.0
    %562 = vmatprep.subr.mxu0 0.0
    %563 = vmatpush1.msra.mxu0 0.0
    %564 = vmatprep.subr.mxu0 0.0
    %565 = vmatpush1.msra.mxu0 0.0
    %566 = vmatprep.subr.mxu0 0.0
    %567 = vmatpush1.msra.mxu0 0.0
    %568 = vmatprep.subr.mxu0 0.0
    %569 = vmatpush1.msra.mxu0 0.0
    %570 = vmatprep.subr.mxu0 0.0
    %571 = vmatpush1.msra.mxu0 0.0
    %572 = vmatprep.subr.mxu0 0.0
    %573 = vmatpush1.msra.mxu0 0.0
    %574 = vmatprep.subr.mxu0 0.0
    %575 = vmatpush1.msra.mxu0 0.0
    %576 = vmatprep.subr.mxu0 0.0
    %577 = vmatpush1.msra.mxu0 0.0
    %578 = vmatprep.subr.mxu0 0.0
    %579 = vmatpush1.msra.mxu0 0.0
    %580 = vmatprep.subr.mxu0 0.0
    %581 = vmatpush1.msra.mxu0 0.0
    %582 = vmatprep.subr.mxu0 0.0
    %583 = vmatpush1.msra.mxu0 0.0
    %584 = vmatprep.subr.mxu0 0.0
    %585 = vmatpush1.msra.mxu0 0.0
    %586 = vmatprep.subr.mxu0 0.0
    %587 = vmatpush1.msra.mxu0 0.0
    %588 = vmatprep.subr.mxu0 0.0
    %589 = vmatpush1.msra.mxu0 0.0
    %590 = vmatprep.subr.mxu0 0.0
    %591 = vmatpush1.msra.mxu0 0.0
    %592 = vmatprep.mubr.f32.mxu0 0.0
    %593 = vmatmul.mubr.f32.gmra.mrb[0].mxu0 %v526
    %v594 = vpop.f32.mrb[0].mxu0
    %v595 = vadd.f32 0.0, %v594
    %v596 = vpop.f32.mrb[0].mxu0
    %597 = vdwg.mxu0
    %598 = vrot.lane.b32.xlu0 %v146, 120
    %v599 = vpop.permute.xlu0 %598
    %600 = vrot.lane.b32.xlu0 %v255, 120
    %v601 = vpop.permute.xlu0 %600
    %v602 = vsel %vm267, %v599, 0
    %v604 = vsel %vm267, %v601, 0
    %606 = vmatprep.subr.mxu0 0.0
    %607 = vmatpush1.xpose.msra.mxu0 %v604
    %608 = vmatprep.subr.mxu0 0.0
    %609 = vmatpush1.xpose.msra.mxu0 0.0
    %610 = vmatprep.subr.mxu0 0.0
    %611 = vmatpush1.xpose.msra.mxu0 0.0
    %612 = vmatprep.subr.mxu0 0.0
    %613 = vmatpush1.xpose.msra.mxu0 0.0
    %614 = vmatprep.subr.mxu0 0.0
    %615 = vmatpush1.xpose.msra.mxu0 0.0
    %616 = vmatprep.subr.mxu0 0.0
    %617 = vmatpush1.xpose.msra.mxu0 0.0
    %618 = vmatprep.subr.mxu0 0.0
    %619 = vmatpush1.xpose.msra.mxu0 0.0
    %620 = vmatprep.subr.mxu0 0.0
    %621 = vmatpush1.xpose.msra.mxu0 0.0
    %622 = vmatprep.subr.mxu0 0.0
    %623 = vmatpush1.xpose.msra.mxu0 0.0
    %624 = vmatprep.subr.mxu0 0.0
    %625 = vmatpush1.xpose.msra.mxu0 0.0
    %626 = vmatprep.subr.mxu0 0.0
    %627 = vmatpush1.xpose.msra.mxu0 0.0
    %628 = vmatprep.subr.mxu0 0.0
    %629 = vmatpush1.xpose.msra.mxu0 0.0
    %630 = vmatprep.subr.mxu0 0.0
    %631 = vmatpush1.xpose.msra.mxu0 0.0
    %632 = vmatprep.subr.mxu0 0.0
    %633 = vmatpush1.xpose.msra.mxu0 0.0
    %634 = vmatprep.subr.mxu0 0.0
    %635 = vmatpush1.xpose.msra.mxu0 0.0
    %636 = vmatprep.subr.mxu0 0.0
    %637 = vmatpush1.xpose.msra.mxu0 0.0
    %638 = vmatprep.subr.mxu0 0.0
    %639 = vmatpush1.xpose.msra.mxu0 0.0
    %640 = vmatprep.subr.mxu0 0.0
    %641 = vmatpush1.xpose.msra.mxu0 0.0
    %642 = vmatprep.subr.mxu0 0.0
    %643 = vmatpush1.xpose.msra.mxu0 0.0
    %644 = vmatprep.subr.mxu0 0.0
    %645 = vmatpush1.xpose.msra.mxu0 0.0
    %646 = vmatprep.subr.mxu0 0.0
    %647 = vmatpush1.xpose.msra.mxu0 0.0
    %648 = vmatprep.subr.mxu0 0.0
    %649 = vmatpush1.xpose.msra.mxu0 0.0
    %650 = vmatprep.subr.mxu0 0.0
    %651 = vmatpush1.xpose.msra.mxu0 0.0
    %652 = vmatprep.subr.mxu0 0.0
    %653 = vmatpush1.xpose.msra.mxu0 0.0
    %654 = vmatprep.subr.mxu0 0.0
    %655 = vmatpush1.xpose.msra.mxu0 0.0
    %656 = vmatprep.subr.mxu0 0.0
    %657 = vmatpush1.xpose.msra.mxu0 0.0
    %658 = vmatprep.subr.mxu0 0.0
    %659 = vmatpush1.xpose.msra.mxu0 0.0
    %660 = vmatprep.subr.mxu0 0.0
    %661 = vmatpush1.xpose.msra.mxu0 0.0
    %662 = vmatprep.subr.mxu0 0.0
    %663 = vmatpush1.xpose.msra.mxu0 0.0
    %664 = vmatprep.subr.mxu0 0.0
    %665 = vmatpush1.xpose.msra.mxu0 0.0
    %666 = vmatprep.subr.mxu0 0.0
    %667 = vmatpush1.xpose.msra.mxu0 0.0
    %668 = vmatprep.subr.mxu0 0.0
    %669 = vmatpush1.xpose.msra.mxu0 0.0
    %670 = vmatprep.mubr.f32.mxu0 0.0
    %671 = vmatmul.mubr.f32.gmra.mrb[0].mxu0 %v602
    %v672 = vpop.f32.mrb[0].mxu0
    %v673 = vadd.f32 0.0, %v672
    %v674 = vpop.f32.mrb[0].mxu0
    %675 = vdwg.mxu0
    %676 = vrot.lane.b32.xlu0 %v151, 120
    %v677 = vpop.permute.xlu0 %676
    %678 = vrot.lane.b32.xlu0 %v256, 120
    %v679 = vpop.permute.xlu0 %678
    %v680 = vsel %vm267, %v677, 0
    %v682 = vsel %vm267, %v679, 0
    %684 = vmatprep.subr.mxu0 0.0
    %685 = vmatpush1.xpose.msra.mxu0 %v682
    %686 = vmatprep.subr.mxu0 0.0
    %687 = vmatpush1.xpose.msra.mxu0 0.0
    %688 = vmatprep.subr.mxu0 0.0
    %689 = vmatpush1.xpose.msra.mxu0 0.0
    %690 = vmatprep.subr.mxu0 0.0
    %691 = vmatpush1.xpose.msra.mxu0 0.0
    %692 = vmatprep.subr.mxu0 0.0
    %693 = vmatpush1.xpose.msra.mxu0 0.0
    %694 = vmatprep.subr.mxu0 0.0
    %695 = vmatpush1.xpose.msra.mxu0 0.0
    %696 = vmatprep.subr.mxu0 0.0
    %697 = vmatpush1.xpose.msra.mxu0 0.0
    %698 = vmatprep.subr.mxu0 0.0
    %699 = vmatpush1.xpose.msra.mxu0 0.0
    %700 = vmatprep.subr.mxu0 0.0
    %701 = vmatpush1.xpose.msra.mxu0 0.0
    %702 = vmatprep.subr.mxu0 0.0
    %703 = vmatpush1.xpose.msra.mxu0 0.0
    %704 = vmatprep.subr.mxu0 0.0
    %705 = vmatpush1.xpose.msra.mxu0 0.0
    %706 = vmatprep.subr.mxu0 0.0
    %707 = vmatpush1.xpose.msra.mxu0 0.0
    %708 = vmatprep.subr.mxu0 0.0
    %709 = vmatpush1.xpose.msra.mxu0 0.0
    %710 = vmatprep.subr.mxu0 0.0
    %711 = vmatpush1.xpose.msra.mxu0 0.0
    %712 = vmatprep.subr.mxu0 0.0
    %713 = vmatpush1.xpose.msra.mxu0 0.0
    %714 = vmatprep.subr.mxu0 0.0
    %715 = vmatpush1.xpose.msra.mxu0 0.0
    %716 = vmatprep.subr.mxu0 0.0
    %717 = vmatpush1.xpose.msra.mxu0 0.0
    %718 = vmatprep.subr.mxu0 0.0
    %719 = vmatpush1.xpose.msra.mxu0 0.0
    %720 = vmatprep.subr.mxu0 0.0
    %721 = vmatpush1.xpose.msra.mxu0 0.0
    %722 = vmatprep.subr.mxu0 0.0
    %723 = vmatpush1.xpose.msra.mxu0 0.0
    %724 = vmatprep.subr.mxu0 0.0
    %725 = vmatpush1.xpose.msra.mxu0 0.0
    %726 = vmatprep.subr.mxu0 0.0
    %727 = vmatpush1.xpose.msra.mxu0 0.0
    %728 = vmatprep.subr.mxu0 0.0
    %729 = vmatpush1.xpose.msra.mxu0 0.0
    %730 = vmatprep.subr.mxu0 0.0
    %731 = vmatpush1.xpose.msra.mxu0 0.0
    %732 = vmatprep.subr.mxu0 0.0
    %733 = vmatpush1.xpose.msra.mxu0 0.0
    %734 = vmatprep.subr.mxu0 0.0
    %735 = vmatpush1.xpose.msra.mxu0 0.0
    %736 = vmatprep.subr.mxu0 0.0
    %737 = vmatpush1.xpose.msra.mxu0 0.0
    %738 = vmatprep.subr.mxu0 0.0
    %739 = vmatpush1.xpose.msra.mxu0 0.0
    %740 = vmatprep.subr.mxu0 0.0
    %741 = vmatpush1.xpose.msra.mxu0 0.0
    %742 = vmatprep.subr.mxu0 0.0
    %743 = vmatpush1.xpose.msra.mxu0 0.0
    %744 = vmatprep.subr.mxu0 0.0
    %745 = vmatpush1.xpose.msra.mxu0 0.0
    %746 = vmatprep.subr.mxu0 0.0
    %747 = vmatpush1.xpose.msra.mxu0 0.0
    %748 = vmatprep.mubr.f32.mxu0 0.0
    %749 = vmatmul.mubr.f32.gmra.mrb[0].mxu0 %v680
    %v750 = vpop.f32.mrb[0].mxu0
    %v751 = vadd.f32 0.0, %v750
    %v752 = vpop.f32.mrb[0].mxu0
    %753 = vdwg.mxu0
    %v754 = vmul.f32 %v673, 0.35355338
    %v755 = vmul.f32 %v751, 0.35355338
    %v756 = vsel %vm267, %v754, -inf
    %757 = vmax.xlane.f32.xlu0 %v756
    %v758 = vpop.xlane.xlu0 %757
    %v759 = vsel %vm267, %v755, -inf
    %760 = vmax.xlane.f32.xlu0 %v759
    %v761 = vpop.xlane.xlu0 %760
    %v762 = vsub.f32 %v754, %v758
    %v763 = vsub.f32 %v755, %v761
    %v764 = vmul.f32 %v762, 1.442695
    %v765 = vpow.pop %v764
    %v766 = vmul.f32 %v763, 1.442695
    %v767 = vpow.pop %v766
    %v768 = vsel %vm267, %v765, 0.0
    %769 = vadd.xlane.f32.xlu0 %v768
    %v770 = vpop.xlane.xlu0 %769
    %v771 = vsel %vm267, %v767, 0.0
    %772 = vadd.xlane.f32.xlu0 %v771
    %v773 = vpop.xlane.xlu0 %772
    %v774 = vrcp.pop %v770
    %v775 = vmul.f32 %v765, %v774
    %v776 = vrcp.pop %v773
    %v777 = vmul.f32 %v767, %v776
    %778 = vrot.lane.b32.xlu0 %v265, 88
    %v779 = vpop.permute.xlu0 %778
    %v782 = vsel %vm267, %v775, 0
    %784 = vmatprep.subr.mxu0 0.0
    %785 = vmatpush1.msra.mxu0 %v779
    %786 = vmatprep.subr.mxu0 0.0
    %787 = vmatpush1.msra.mxu0 0.0
    %788 = vmatprep.subr.mxu0 0.0
    %789 = vmatpush1.msra.mxu0 0.0
    %790 = vmatprep.subr.mxu0 0.0
    %791 = vmatpush1.msra.mxu0 0.0
    %792 = vmatprep.subr.mxu0 0.0
    %793 = vmatpush1.msra.mxu0 0.0
    %794 = vmatprep.subr.mxu0 0.0
    %795 = vmatpush1.msra.mxu0 0.0
    %796 = vmatprep.subr.mxu0 0.0
    %797 = vmatpush1.msra.mxu0 0.0
    %798 = vmatprep.subr.mxu0 0.0
    %799 = vmatpush1.msra.mxu0 0.0
    %800 = vmatprep.subr.mxu0 0.0
    %801 = vmatpush1.msra.mxu0 0.0
    %802 = vmatprep.subr.mxu0 0.0
    %803 = vmatpush1.msra.mxu0 0.0
    %804 = vmatprep.subr.mxu0 0.0
    %805 = vmatpush1.msra.mxu0 0.0
    %806 = vmatprep.subr.mxu0 0.0
    %807 = vmatpush1.msra.mxu0 0.0
    %808 = vmatprep.subr.mxu0 0.0
    %809 = vmatpush1.msra.mxu0 0.0
    %810 = vmatprep.subr.mxu0 0.0
    %811 = vmatpush1.msra.mxu0 0.0
    %812 = vmatprep.subr.mxu0 0.0
    %813 = vmatpush1.msra.mxu0 0.0
    %814 = vmatprep.subr.mxu0 0.0
    %815 = vmatpush1.msra.mxu0 0.0
    %816 = vmatprep.subr.mxu0 0.0
    %817 = vmatpush1.msra.mxu0 0.0
    %818 = vmatprep.subr.mxu0 0.0
    %819 = vmatpush1.msra.mxu0 0.0
    %820 = vmatprep.subr.mxu0 0.0
    %821 = vmatpush1.msra.mxu0 0.0
    %822 = vmatprep.subr.mxu0 0.0
    %823 = vmatpush1.msra.mxu0 0.0
    %824 = vmatprep.subr.mxu0 0.0
    %825 = vmatpush1.msra.mxu0 0.0
    %826 = vmatprep.subr.mxu0 0.0
    %827 = vmatpush1.msra.mxu0 0.0
    %828 = vmatprep.subr.mxu0 0.0
    %829 = vmatpush1.msra.mxu0 0.0
    %830 = vmatprep.subr.mxu0 0.0
    %831 = vmatpush1.msra.mxu0 0.0
    %832 = vmatprep.subr.mxu0 0.0
    %833 = vmatpush1.msra.mxu0 0.0
    %834 = vmatprep.subr.mxu0 0.0
    %835 = vmatpush1.msra.mxu0 0.0
    %836 = vmatprep.subr.mxu0 0.0
    %837 = vmatpush1.msra.mxu0 0.0
    %838 = vmatprep.subr.mxu0 0.0
    %839 = vmatpush1.msra.mxu0 0.0
    %840 = vmatprep.subr.mxu0 0.0
    %841 = vmatpush1.msra.mxu0 0.0
    %842 = vmatprep.subr.mxu0 0.0
    %843 = vmatpush1.msra.mxu0 0.0
    %844 = vmatprep.subr.mxu0 0.0
    %845 = vmatpush1.msra.mxu0 0.0
    %846 = vmatprep.subr.mxu0 0.0
    %847 = vmatpush1.msra.mxu0 0.0
    %848 = vmatprep.mubr.f32.mxu0 0.0
    %849 = vmatmul.mubr.f32.gmra.mrb[0].mxu0 %v782
    %v850 = vpop.f32.mrb[0].mxu0
    %v851 = vadd.f32 0.0, %v850
    %v852 = vpop.f32.mrb[0].mxu0
    %853 = vdwg.mxu0
    %854 = vrot.lane.b32.xlu0 %v266, 88
    %v855 = vpop.permute.xlu0 %854
    %v858 = vsel %vm267, %v777, 0
    %860 = vmatprep.subr.mxu0 0.0
    %861 = vmatpush1.msra.mxu0 %v855
    %862 = vmatprep.subr.mxu0 0.0
    %863 = vmatpush1.msra.mxu0 0.0
    %864 = vmatprep.subr.mxu0 0.0
    %865 = vmatpush1.msra.mxu0 0.0
    %866 = vmatprep.subr.mxu0 0.0
    %867 = vmatpush1.msra.mxu0 0.0
    %868 = vmatprep.subr.mxu0 0.0
    %869 = vmatpush1.msra.mxu0 0.0
    %870 = vmatprep.subr.mxu0 0.0
    %871 = vmatpush1.msra.mxu0 0.0
    %872 = vmatprep.subr.mxu0 0.0
    %873 = vmatpush1.msra.mxu0 0.0
    %874 = vmatprep.subr.mxu0 0.0
    %875 = vmatpush1.msra.mxu0 0.0
    %876 = vmatprep.subr.mxu0 0.0
    %877 = vmatpush1.msra.mxu0 0.0
    %878 = vmatprep.subr.mxu0 0.0
    %879 = vmatpush1.msra.mxu0 0.0
    %880 = vmatprep.subr.mxu0 0.0
    %881 = vmatpush1.msra.mxu0 0.0
    %882 = vmatprep.subr.mxu0 0.0
    %883 = vmatpush1.msra.mxu0 0.0
    %884 = vmatprep.subr.mxu0 0.0
    %885 = vmatpush1.msra.mxu0 0.0
    %886 = vmatprep.subr.mxu0 0.0
    %887 = vmatpush1.msra.mxu0 0.0
    %888 = vmatprep.subr.mxu0 0.0
    %889 = vmatpush1.msra.mxu0 0.0
    %890 = vmatprep.subr.mxu0 0.0
    %891 = vmatpush1.msra.mxu0 0.0
    %892 = vmatprep.subr.mxu0 0.0
    %893 = vmatpush1.msra.mxu0 0.0
    %894 = vmatprep.subr.mxu0 0.0
    %895 = vmatpush1.msra.mxu0 0.0
    %896 = vmatprep.subr.mxu0 0.0
    %897 = vmatpush1.msra.mxu0 0.0
    %898 = vmatprep.subr.mxu0 0.0
    %899 = vmatpush1.msra.mxu0 0.0
    %900 = vmatprep.subr.mxu0 0.0
    %901 = vmatpush1.msra.mxu0 0.0
    %902 = vmatprep.subr.mxu0 0.0
    %903 = vmatpush1.msra.mxu0 0.0
    %904 = vmatprep.subr.mxu0 0.0
    %905 = vmatpush1.msra.mxu0 0.0
    %906 = vmatprep.subr.mxu0 0.0
    %907 = vmatpush1.msra.mxu0 0.0
    %908 = vmatprep.subr.mxu0 0.0
    %909 = vmatpush1.msra.mxu0 0.0
    %910 = vmatprep.subr.mxu0 0.0
    %911 = vmatpush1.msra.mxu0 0.0
    %912 = vmatprep.subr.mxu0 0.0
    %913 = vmatpush1.msra.mxu0 0.0
    %914 = vmatprep.subr.mxu0 0.0
    %915 = vmatpush1.msra.mxu0 0.0
    %916 = vmatprep.subr.mxu0 0.0
    %917 = vmatpush1.msra.mxu0 0.0
    %918 = vmatprep.subr.mxu0 0.0
    %919 = vmatpush1.msra.mxu0 0.0
    %920 = vmatprep.subr.mxu0 0.0
    %921 = vmatpush1.msra.mxu0 0.0
    %922 = vmatprep.subr.mxu0 0.0
    %923 = vmatpush1.msra.mxu0 0.0
    %924 = vmatprep.mubr.f32.mxu0 0.0
    %925 = vmatmul.mubr.f32.gmra.mrb[0].mxu0 %v858
    %v926 = vpop.f32.mrb[0].mxu0
    %v927 = vadd.f32 0.0, %v926
    %v928 = vpop.f32.mrb[0].mxu0
    %929 = vdwg.mxu0
    %930 = vrot.lane.b32.xlu0 %v146, 112
    %v931 = vpop.permute.xlu0 %930
    %932 = vrot.lane.b32.xlu0 %v255, 112
    %v933 = vpop.permute.xlu0 %932
    %v934 = vsel %vm267, %v931, 0
    %v936 = vsel %vm267, %v933, 0
    %938 = vmatprep.subr.mxu0 0.0
    %939 = vmatpush1.xpose.msra.mxu0 %v936
    %940 = vmatprep.subr.mxu0 0.0
    %941 = vmatpush1.xpose.msra.mxu0 0.0
    %942 = vmatprep.subr.mxu0 0.0
    %943 = vmatpush1.xpose.msra.mxu0 0.0
    %944 = vmatprep.subr.mxu0 0.0
    %945 = vmatpush1.xpose.msra.mxu0 0.0
    %946 = vmatprep.subr.mxu0 0.0
    %947 = vmatpush1.xpose.msra.mxu0 0.0
    %948 = vmatprep.subr.mxu0 0.0
    %949 = vmatpush1.xpose.msra.mxu0 0.0
    %950 = vmatprep.subr.mxu0 0.0
    %951 = vmatpush1.xpose.msra.mxu0 0.0
    %952 = vmatprep.subr.mxu0 0.0
    %953 = vmatpush1.xpose.msra.mxu0 0.0
    %954 = vmatprep.subr.mxu0 0.0
    %955 = vmatpush1.xpose.msra.mxu0 0.0
    %956 = vmatprep.subr.mxu0 0.0
    %957 = vmatpush1.xpose.msra.mxu0 0.0
    %958 = vmatprep.subr.mxu0 0.0
    %959 = vmatpush1.xpose.msra.mxu0 0.0
    %960 = vmatprep.subr.mxu0 0.0
    %961 = vmatpush1.xpose.msra.mxu0 0.0
    %962 = vmatprep.subr.mxu0 0.0
    %963 = vmatpush1.xpose.msra.mxu0 0.0
    %964 = vmatprep.subr.mxu0 0.0
    %965 = vmatpush1.xpose.msra.mxu0 0.0
    %966 = vmatprep.subr.mxu0 0.0
    %967 = vmatpush1.xpose.msra.mxu0 0.0
    %968 = vmatprep.subr.mxu0 0.0
    %969 = vmatpush1.xpose.msra.mxu0 0.0
    %970 = vmatprep.subr.mxu0 0.0
    %971 = vmatpush1.xpose.msra.mxu0 0.0
    %972 = vmatprep.subr.mxu0 0.0
    %973 = vmatpush1.xpose.msra.mxu0 0.0
    %974 = vmatprep.subr.mxu0 0.0
    %975 = vmatpush1.xpose.msra.mxu0 0.0
    %976 = vmatprep.subr.mxu0 0.0
    %977 = vmatpush1.xpose.msra.mxu0 0.0
    %978 = vmatprep.subr.mxu0 0.0
    %979 = vmatpush1.xpose.msra.mxu0 0.0
    %980 = vmatprep.subr.mxu0 0.0
    %981 = vmatpush1.xpose.msra.mxu0 0.0
    %982 = vmatprep.subr.mxu0 0.0
    %983 = vmatpush1.xpose.msra.mxu0 0.0
    %984 = vmatprep.subr.mxu0 0.0
    %985 = vmatpush1.xpose.msra.mxu0 0.0
    %986 = vmatprep.subr.mxu0 0.0
    %987 = vmatpush1.xpose.msra.mxu0 0.0
    %988 = vmatprep.subr.mxu0 0.0
    %989 = vmatpush1.xpose.msra.mxu0 0.0
    %990 = vmatprep.subr.mxu0 0.0
    %991 = vmatpush1.xpose.msra.mxu0 0.0
    %992 = vmatprep.subr.mxu0 0.0
    %993 = vmatpush1.xpose.msra.mxu0 0.0
    %994 = vmatprep.subr.mxu0 0.0
    %995 = vmatpush1.xpose.msra.mxu0 0.0
    %996 = vmatprep.subr.mxu0 0.0
    %997 = vmatpush1.xpose.msra.mxu0 0.0
    %998 = vmatprep.subr.mxu0 0.0
    %999 = vmatpush1.xpose.msra.mxu0 0.0
    %1000 = vmatprep.subr.mxu0 0.0
    %1001 = vmatpush1.xpose.msra.mxu0 0.0
    %1002 = vmatprep.mubr.f32.mxu0 0.0
    %1003 = vmatmul.mubr.f32.gmra.mrb[0].mxu0 %v934
    %v1004 = vpop.f32.mrb[0].mxu0
    %v1005 = vadd.f32 0.0, %v1004
    %v1006 = vpop.f32.mrb[0].mxu0
    %1007 = vdwg.mxu0
    %1008 = vrot.lane.b32.xlu0 %v151, 112
    %v1009 = vpop.permute.xlu0 %1008
    %1010 = vrot.lane.b32.xlu0 %v256, 112
    %v1011 = vpop.permute.xlu0 %1010
    %v1012 = vsel %vm267, %v1009, 0
    %v1014 = vsel %vm267, %v1011, 0
    %1016 = vmatprep.subr.mxu0 0.0
    %1017 = vmatpush1.xpose.msra.mxu0 %v1014
    %1018 = vmatprep.subr.mxu0 0.0
    %1019 = vmatpush1.xpose.msra.mxu0 0.0
    %1020 = vmatprep.subr.mxu0 0.0
    %1021 = vmatpush1.xpose.msra.mxu0 0.0
    %1022 = vmatprep.subr.mxu0 0.0
    %1023 = vmatpush1.xpose.msra.mxu0 0.0
    %1024 = vmatprep.subr.mxu0 0.0
    %1025 = vmatpush1.xpose.msra.mxu0 0.0
    %1026 = vmatprep.subr.mxu0 0.0
    %1027 = vmatpush1.xpose.msra.mxu0 0.0
    %1028 = vmatprep.subr.mxu0 0.0
    %1029 = vmatpush1.xpose.msra.mxu0 0.0
    %1030 = vmatprep.subr.mxu0 0.0
    %1031 = vmatpush1.xpose.msra.mxu0 0.0
    %1032 = vmatprep.subr.mxu0 0.0
    %1033 = vmatpush1.xpose.msra.mxu0 0.0
    %1034 = vmatprep.subr.mxu0 0.0
    %1035 = vmatpush1.xpose.msra.mxu0 0.0
    %1036 = vmatprep.subr.mxu0 0.0
    %1037 = vmatpush1.xpose.msra.mxu0 0.0
    %1038 = vmatprep.subr.mxu0 0.0
    %1039 = vmatpush1.xpose.msra.mxu0 0.0
    %1040 = vmatprep.subr.mxu0 0.0
    %1041 = vmatpush1.xpose.msra.mxu0 0.0
    %1042 = vmatprep.subr.mxu0 0.0
    %1043 = vmatpush1.xpose.msra.mxu0 0.0
    %1044 = vmatprep.subr.mxu0 0.0
    %1045 = vmatpush1.xpose.msra.mxu0 0.0
    %1046 = vmatprep.subr.mxu0 0.0
    %1047 = vmatpush1.xpose.msra.mxu0 0.0
    %1048 = vmatprep.subr.mxu0 0.0
    %1049 = vmatpush1.xpose.msra.mxu0 0.0
    %1050 = vmatprep.subr.mxu0 0.0
    %1051 = vmatpush1.xpose.msra.mxu0 0.0
    %1052 = vmatprep.subr.mxu0 0.0
    %1053 = vmatpush1.xpose.msra.mxu0 0.0
    %1054 = vmatprep.subr.mxu0 0.0
    %1055 = vmatpush1.xpose.msra.mxu0 0.0
    %1056 = vmatprep.subr.mxu0 0.0
    %1057 = vmatpush1.xpose.msra.mxu0 0.0
    %1058 = vmatprep.subr.mxu0 0.0
    %1059 = vmatpush1.xpose.msra.mxu0 0.0
    %1060 = vmatprep.subr.mxu0 0.0
    %1061 = vmatpush1.xpose.msra.mxu0 0.0
    %1062 = vmatprep.subr.mxu0 0.0
    %1063 = vmatpush1.xpose.msra.mxu0 0.0
    %1064 = vmatprep.subr.mxu0 0.0
    %1065 = vmatpush1.xpose.msra.mxu0 0.0
    %1066 = vmatprep.subr.mxu0 0.0
    %1067 = vmatpush1.xpose.msra.mxu0 0.0
    %1068 = vmatprep.subr.mxu0 0.0
    %1069 = vmatpush1.xpose.msra.mxu0 0.0
    %1070 = vmatprep.subr.mxu0 0.0
    %1071 = vmatpush1.xpose.msra.mxu0 0.0
    %1072 = vmatprep.subr.mxu0 0.0
    %1073 = vmatpush1.xpose.msra.mxu0 0.0
    %1074 = vmatprep.subr.mxu0 0.0
    %1075 = vmatpush1.xpose.msra.mxu0 0.0
    %1076 = vmatprep.subr.mxu0 0.0
    %1077 = vmatpush1.xpose.msra.mxu0 0.0
    %1078 = vmatprep.subr.mxu0 0.0
    %1079 = vmatpush1.xpose.msra.mxu0 0.0
    %1080 = vmatprep.mubr.f32.mxu0 0.0
    %1081 = vmatmul.mubr.f32.gmra.mrb[0].mxu0 %v1012
    %v1082 = vpop.f32.mrb[0].mxu0
    %v1083 = vadd.f32 0.0, %v1082
    %v1084 = vpop.f32.mrb[0].mxu0
    %1085 = vdwg.mxu0
    %v1086 = vmul.f32 %v1005, 0.35355338
    %v1087 = vmul.f32 %v1083, 0.35355338
    %v1088 = vsel %vm267, %v1086, -inf
    %1089 = vmax.xlane.f32.xlu0 %v1088
    %v1090 = vpop.xlane.xlu0 %1089
    %v1091 = vsel %vm267, %v1087, -inf
    %1092 = vmax.xlane.f32.xlu0 %v1091
    %v1093 = vpop.xlane.xlu0 %1092
    %v1094 = vsub.f32 %v1086, %v1090
    %v1095 = vsub.f32 %v1087, %v1093
    %v1096 = vmul.f32 %v1094, 1.442695
    %v1097 = vpow.pop %v1096
    %v1098 = vmul.f32 %v1095, 1.442695
    %v1099 = vpow.pop %v1098
    %v1100 = vsel %vm267, %v1097, 0.0
    %1101 = vadd.xlane.f32.xlu0 %v1100
    %v1102 = vpop.xlane.xlu0 %1101
    %v1103 = vsel %vm267, %v1099, 0.0
    %1104 = vadd.xlane.f32.xlu0 %v1103
    %v1105 = vpop.xlane.xlu0 %1104
    %v1106 = vrcp.pop %v1102
    %v1107 = vmul.f32 %v1097, %v1106
    %v1108 = vrcp.pop %v1105
    %v1109 = vmul.f32 %v1099, %v1108
    %1110 = vrot.lane.b32.xlu0 %v265, 80
    %v1111 = vpop.permute.xlu0 %1110
    %v1114 = vsel %vm267, %v1107, 0
    %1116 = vmatprep.subr.mxu0 0.0
    %1117 = vmatpush1.msra.mxu0 %v1111
    %1118 = vmatprep.subr.mxu0 0.0
    %1119 = vmatpush1.msra.mxu0 0.0
    %1120 = vmatprep.subr.mxu0 0.0
    %1121 = vmatpush1.msra.mxu0 0.0
    %1122 = vmatprep.subr.mxu0 0.0
    %1123 = vmatpush1.msra.mxu0 0.0
    %1124 = vmatprep.subr.mxu0 0.0
    %1125 = vmatpush1.msra.mxu0 0.0
    %1126 = vmatprep.subr.mxu0 0.0
    %1127 = vmatpush1.msra.mxu0 0.0
    %1128 = vmatprep.subr.mxu0 0.0
    %1129 = vmatpush1.msra.mxu0 0.0
    %1130 = vmatprep.subr.mxu0 0.0
    %1131 = vmatpush1.msra.mxu0 0.0
    %1132 = vmatprep.subr.mxu0 0.0
    %1133 = vmatpush1.msra.mxu0 0.0
    %1134 = vmatprep.subr.mxu0 0.0
    %1135 = vmatpush1.msra.mxu0 0.0
    %1136 = vmatprep.subr.mxu0 0.0
    %1137 = vmatpush1.msra.mxu0 0.0
    %1138 = vmatprep.subr.mxu0 0.0
    %1139 = vmatpush1.msra.mxu0 0.0
    %1140 = vmatprep.subr.mxu0 0.0
    %1141 = vmatpush1.msra.mxu0 0.0
    %1142 = vmatprep.subr.mxu0 0.0
    %1143 = vmatpush1.msra.mxu0 0.0
    %1144 = vmatprep.subr.mxu0 0.0
    %1145 = vmatpush1.msra.mxu0 0.0
    %1146 = vmatprep.subr.mxu0 0.0
    %1147 = vmatpush1.msra.mxu0 0.0
    %1148 = vmatprep.subr.mxu0 0.0
    %1149 = vmatpush1.msra.mxu0 0.0
    %1150 = vmatprep.subr.mxu0 0.0
    %1151 = vmatpush1.msra.mxu0 0.0
    %1152 = vmatprep.subr.mxu0 0.0
    %1153 = vmatpush1.msra.mxu0 0.0
    %1154 = vmatprep.subr.mxu0 0.0
    %1155 = vmatpush1.msra.mxu0 0.0
    %1156 = vmatprep.subr.mxu0 0.0
    %1157 = vmatpush1.msra.mxu0 0.0
    %1158 = vmatprep.subr.mxu0 0.0
    %1159 = vmatpush1.msra.mxu0 0.0
    %1160 = vmatprep.subr.mxu0 0.0
    %1161 = vmatpush1.msra.mxu0 0.0
    %1162 = vmatprep.subr.mxu0 0.0
    %1163 = vmatpush1.msra.mxu0 0.0
    %1164 = vmatprep.subr.mxu0 0.0
    %1165 = vmatpush1.msra.mxu0 0.0
    %1166 = vmatprep.subr.mxu0 0.0
    %1167 = vmatpush1.msra.mxu0 0.0
    %1168 = vmatprep.subr.mxu0 0.0
    %1169 = vmatpush1.msra.mxu0 0.0
    %1170 = vmatprep.subr.mxu0 0.0
    %1171 = vmatpush1.msra.mxu0 0.0
    %1172 = vmatprep.subr.mxu0 0.0
    %1173 = vmatpush1.msra.mxu0 0.0
    %1174 = vmatprep.subr.mxu0 0.0
    %1175 = vmatpush1.msra.mxu0 0.0
    %1176 = vmatprep.subr.mxu0 0.0
    %1177 = vmatpush1.msra.mxu0 0.0
    %1178 = vmatprep.subr.mxu0 0.0
    %1179 = vmatpush1.msra.mxu0 0.0
    %1180 = vmatprep.mubr.f32.mxu0 0.0
    %1181 = vmatmul.mubr.f32.gmra.mrb[0].mxu0 %v1114
    %v1182 = vpop.f32.mrb[0].mxu0
    %v1183 = vadd.f32 0.0, %v1182
    %v1184 = vpop.f32.mrb[0].mxu0
    %1185 = vdwg.mxu0
    %1186 = vrot.lane.b32.xlu0 %v266, 80
    %v1187 = vpop.permute.xlu0 %1186
    %v1190 = vsel %vm267, %v1109, 0
    %1192 = vmatprep.subr.mxu0 0.0
    %1193 = vmatpush1.msra.mxu0 %v1187
    %1194 = vmatprep.subr.mxu0 0.0
    %1195 = vmatpush1.msra.mxu0 0.0
    %1196 = vmatprep.subr.mxu0 0.0
    %1197 = vmatpush1.msra.mxu0 0.0
    %1198 = vmatprep.subr.mxu0 0.0
    %1199 = vmatpush1.msra.mxu0 0.0
    %1200 = vmatprep.subr.mxu0 0.0
    %1201 = vmatpush1.msra.mxu0 0.0
    %1202 = vmatprep.subr.mxu0 0.0
    %1203 = vmatpush1.msra.mxu0 0.0
    %1204 = vmatprep.subr.mxu0 0.0
    %1205 = vmatpush1.msra.mxu0 0.0
    %1206 = vmatprep.subr.mxu0 0.0
    %1207 = vmatpush1.msra.mxu0 0.0
    %1208 = vmatprep.subr.mxu0 0.0
    %1209 = vmatpush1.msra.mxu0 0.0
    %1210 = vmatprep.subr.mxu0 0.0
    %1211 = vmatpush1.msra.mxu0 0.0
    %1212 = vmatprep.subr.mxu0 0.0
    %1213 = vmatpush1.msra.mxu0 0.0
    %1214 = vmatprep.subr.mxu0 0.0
    %1215 = vmatpush1.msra.mxu0 0.0
    %1216 = vmatprep.subr.mxu0 0.0
    %1217 = vmatpush1.msra.mxu0 0.0
    %1218 = vmatprep.subr.mxu0 0.0
    %1219 = vmatpush1.msra.mxu0 0.0
    %1220 = vmatprep.subr.mxu0 0.0
    %1221 = vmatpush1.msra.mxu0 0.0
    %1222 = vmatprep.subr.mxu0 0.0
    %1223 = vmatpush1.msra.mxu0 0.0
    %1224 = vmatprep.subr.mxu0 0.0
    %1225 = vmatpush1.msra.mxu0 0.0
    %1226 = vmatprep.subr.mxu0 0.0
    %1227 = vmatpush1.msra.mxu0 0.0
    %1228 = vmatprep.subr.mxu0 0.0
    %1229 = vmatpush1.msra.mxu0 0.0
    %1230 = vmatprep.subr.mxu0 0.0
    %1231 = vmatpush1.msra.mxu0 0.0
    %1232 = vmatprep.subr.mxu0 0.0
    %1233 = vmatpush1.msra.mxu0 0.0
    %1234 = vmatprep.subr.mxu0 0.0
    %1235 = vmatpush1.msra.mxu0 0.0
    %1236 = vmatprep.subr.mxu0 0.0
    %1237 = vmatpush1.msra.mxu0 0.0
    %1238 = vmatprep.subr.mxu0 0.0
    %1239 = vmatpush1.msra.mxu0 0.0
    %1240 = vmatprep.subr.mxu0 0.0
    %1241 = vmatpush1.msra.mxu0 0.0
    %1242 = vmatprep.subr.mxu0 0.0
    %1243 = vmatpush1.msra.mxu0 0.0
    %1244 = vmatprep.subr.mxu0 0.0
    %1245 = vmatpush1.msra.mxu0 0.0
    %1246 = vmatprep.subr.mxu0 0.0
    %1247 = vmatpush1.msra.mxu0 0.0
    %1248 = vmatprep.subr.mxu0 0.0
    %1249 = vmatpush1.msra.mxu0 0.0
    %1250 = vmatprep.subr.mxu0 0.0
    %1251 = vmatpush1.msra.mxu0 0.0
    %1252 = vmatprep.subr.mxu0 0.0
    %1253 = vmatpush1.msra.mxu0 0.0
    %1254 = vmatprep.subr.mxu0 0.0
    %1255 = vmatpush1.msra.mxu0 0.0
    %1256 = vmatprep.mubr.f32.mxu0 0.0
    %1257 = vmatmul.mubr.f32.gmra.mrb[0].mxu0 %v1190
    %v1258 = vpop.f32.mrb[0].mxu0
    %v1259 = vadd.f32 0.0, %v1258
    %v1260 = vpop.f32.mrb[0].mxu0
    %1261 = vdwg.mxu0
    %1262 = vrot.lane.b32.xlu0 %v146, 104
    %v1263 = vpop.permute.xlu0 %1262
    %1264 = vrot.lane.b32.xlu0 %v255, 104
    %v1265 = vpop.permute.xlu0 %1264
    %v1266 = vsel %vm267, %v1263, 0
    %v1268 = vsel %vm267, %v1265, 0
    %1270 = vmatprep.subr.mxu0 0.0
    %1271 = vmatpush1.xpose.msra.mxu0 %v1268
    %1272 = vmatprep.subr.mxu0 0.0
    %1273 = vmatpush1.xpose.msra.mxu0 0.0
    %1274 = vmatprep.subr.mxu0 0.0
    %1275 = vmatpush1.xpose.msra.mxu0 0.0
    %1276 = vmatprep.subr.mxu0 0.0
    %1277 = vmatpush1.xpose.msra.mxu0 0.0
    %1278 = vmatprep.subr.mxu0 0.0
    %1279 = vmatpush1.xpose.msra.mxu0 0.0
    %1280 = vmatprep.subr.mxu0 0.0
    %1281 = vmatpush1.xpose.msra.mxu0 0.0
    %1282 = vmatprep.subr.mxu0 0.0
    %1283 = vmatpush1.xpose.msra.mxu0 0.0
    %1284 = vmatprep.subr.mxu0 0.0
    %1285 = vmatpush1.xpose.msra.mxu0 0.0
    %1286 = vmatprep.subr.mxu0 0.0
    %1287 = vmatpush1.xpose.msra.mxu0 0.0
    %1288 = vmatprep.subr.mxu0 0.0
    %1289 = vmatpush1.xpose.msra.mxu0 0.0
    %1290 = vmatprep.subr.mxu0 0.0
    %1291 = vmatpush1.xpose.msra.mxu0 0.0
    %1292 = vmatprep.subr.mxu0 0.0
    %1293 = vmatpush1.xpose.msra.mxu0 0.0
    %1294 = vmatprep.subr.mxu0 0.0
    %1295 = vmatpush1.xpose.msra.mxu0 0.0
    %1296 = vmatprep.subr.mxu0 0.0
    %1297 = vmatpush1.xpose.msra.mxu0 0.0
    %1298 = vmatprep.subr.mxu0 0.0
    %1299 = vmatpush1.xpose.msra.mxu0 0.0
    %1300 = vmatprep.subr.mxu0 0.0
    %1301 = vmatpush1.xpose.msra.mxu0 0.0
    %1302 = vmatprep.subr.mxu0 0.0
    %1303 = vmatpush1.xpose.msra.mxu0 0.0
    %1304 = vmatprep.subr.mxu0 0.0
    %1305 = vmatpush1.xpose.msra.mxu0 0.0
    %1306 = vmatprep.subr.mxu0 0.0
    %1307 = vmatpush1.xpose.msra.mxu0 0.0
    %1308 = vmatprep.subr.mxu0 0.0
    %1309 = vmatpush1.xpose.msra.mxu0 0.0
    %1310 = vmatprep.subr.mxu0 0.0
    %1311 = vmatpush1.xpose.msra.mxu0 0.0
    %1312 = vmatprep.subr.mxu0 0.0
    %1313 = vmatpush1.xpose.msra.mxu0 0.0
    %1314 = vmatprep.subr.mxu0 0.0
    %1315 = vmatpush1.xpose.msra.mxu0 0.0
    %1316 = vmatprep.subr.mxu0 0.0
    %1317 = vmatpush1.xpose.msra.mxu0 0.0
    %1318 = vmatprep.subr.mxu0 0.0
    %1319 = vmatpush1.xpose.msra.mxu0 0.0
    %1320 = vmatprep.subr.mxu0 0.0
    %1321 = vmatpush1.xpose.msra.mxu0 0.0
    %1322 = vmatprep.subr.mxu0 0.0
    %1323 = vmatpush1.xpose.msra.mxu0 0.0
    %1324 = vmatprep.subr.mxu0 0.0
    %1325 = vmatpush1.xpose.msra.mxu0 0.0
    %1326 = vmatprep.subr.mxu0 0.0
    %1327 = vmatpush1.xpose.msra.mxu0 0.0
    %1328 = vmatprep.subr.mxu0 0.0
    %1329 = vmatpush1.xpose.msra.mxu0 0.0
    %1330 = vmatprep.subr.mxu0 0.0
    %1331 = vmatpush1.xpose.msra.mxu0 0.0
    %1332 = vmatprep.subr.mxu0 0.0
    %1333 = vmatpush1.xpose.msra.mxu0 0.0
    %1334 = vmatprep.mubr.f32.mxu0 0.0
    %1335 = vmatmul.mubr.f32.gmra.mrb[0].mxu0 %v1266
    %v1336 = vpop.f32.mrb[0].mxu0
    %v1337 = vadd.f32 0.0, %v1336
    %v1338 = vpop.f32.mrb[0].mxu0
    %1339 = vdwg.mxu0
    %1340 = vrot.lane.b32.xlu0 %v151, 104
    %v1341 = vpop.permute.xlu0 %1340
    %1342 = vrot.lane.b32.xlu0 %v256, 104
    %v1343 = vpop.permute.xlu0 %1342
    %v1344 = vsel %vm267, %v1341, 0
    %v1346 = vsel %vm267, %v1343, 0
    %1348 = vmatprep.subr.mxu0 0.0
    %1349 = vmatpush1.xpose.msra.mxu0 %v1346
    %1350 = vmatprep.subr.mxu0 0.0
    %1351 = vmatpush1.xpose.msra.mxu0 0.0
    %1352 = vmatprep.subr.mxu0 0.0
    %1353 = vmatpush1.xpose.msra.mxu0 0.0
    %1354 = vmatprep.subr.mxu0 0.0
    %1355 = vmatpush1.xpose.msra.mxu0 0.0
    %1356 = vmatprep.subr.mxu0 0.0
    %1357 = vmatpush1.xpose.msra.mxu0 0.0
    %1358 = vmatprep.subr.mxu0 0.0
    %1359 = vmatpush1.xpose.msra.mxu0 0.0
    %1360 = vmatprep.subr.mxu0 0.0
    %1361 = vmatpush1.xpose.msra.mxu0 0.0
    %1362 = vmatprep.subr.mxu0 0.0
    %1363 = vmatpush1.xpose.msra.mxu0 0.0
    %1364 = vmatprep.subr.mxu0 0.0
    %1365 = vmatpush1.xpose.msra.mxu0 0.0
    %1366 = vmatprep.subr.mxu0 0.0
    %1367 = vmatpush1.xpose.msra.mxu0 0.0
    %1368 = vmatprep.subr.mxu0 0.0
    %1369 = vmatpush1.xpose.msra.mxu0 0.0
    %1370 = vmatprep.subr.mxu0 0.0
    %1371 = vmatpush1.xpose.msra.mxu0 0.0
    %1372 = vmatprep.subr.mxu0 0.0
    %1373 = vmatpush1.xpose.msra.mxu0 0.0
    %1374 = vmatprep.subr.mxu0 0.0
    %1375 = vmatpush1.xpose.msra.mxu0 0.0
    %1376 = vmatprep.subr.mxu0 0.0
    %1377 = vmatpush1.xpose.msra.mxu0 0.0
    %1378 = vmatprep.subr.mxu0 0.0
    %1379 = vmatpush1.xpose.msra.mxu0 0.0
    %1380 = vmatprep.subr.mxu0 0.0
    %1381 = vmatpush1.xpose.msra.mxu0 0.0
    %1382 = vmatprep.subr.mxu0 0.0
    %1383 = vmatpush1.xpose.msra.mxu0 0.0
    %1384 = vmatprep.subr.mxu0 0.0
    %1385 = vmatpush1.xpose.msra.mxu0 0.0
    %1386 = vmatprep.subr.mxu0 0.0
    %1387 = vmatpush1.xpose.msra.mxu0 0.0
    %1388 = vmatprep.subr.mxu0 0.0
    %1389 = vmatpush1.xpose.msra.mxu0 0.0
    %1390 = vmatprep.subr.mxu0 0.0
    %1391 = vmatpush1.xpose.msra.mxu0 0.0
    %1392 = vmatprep.subr.mxu0 0.0
    %1393 = vmatpush1.xpose.msra.mxu0 0.0
    %1394 = vmatprep.subr.mxu0 0.0
    %1395 = vmatpush1.xpose.msra.mxu0 0.0
    %1396 = vmatprep.subr.mxu0 0.0
    %1397 = vmatpush1.xpose.msra.mxu0 0.0
    %1398 = vmatprep.subr.mxu0 0.0
    %1399 = vmatpush1.xpose.msra.mxu0 0.0
    %1400 = vmatprep.subr.mxu0 0.0
    %1401 = vmatpush1.xpose.msra.mxu0 0.0
    %1402 = vmatprep.subr.mxu0 0.0
    %1403 = vmatpush1.xpose.msra.mxu0 0.0
    %1404 = vmatprep.subr.mxu0 0.0
    %1405 = vmatpush1.xpose.msra.mxu0 0.0
    %1406 = vmatprep.subr.mxu0 0.0
    %1407 = vmatpush1.xpose.msra.mxu0 0.0
    %1408 = vmatprep.subr.mxu0 0.0
    %1409 = vmatpush1.xpose.msra.mxu0 0.0
    %1410 = vmatprep.subr.mxu0 0.0
    %1411 = vmatpush1.xpose.msra.mxu0 0.0
    %1412 = vmatprep.mubr.f32.mxu0 0.0
    %1413 = vmatmul.mubr.f32.gmra.mrb[0].mxu0 %v1344
    %v1414 = vpop.f32.mrb[0].mxu0
    %v1415 = vadd.f32 0.0, %v1414
    %v1416 = vpop.f32.mrb[0].mxu0
    %1417 = vdwg.mxu0
    %v1418 = vmul.f32 %v1337, 0.35355338
    %v1419 = vmul.f32 %v1415, 0.35355338
    %v1420 = vsel %vm267, %v1418, -inf
    %1421 = vmax.xlane.f32.xlu0 %v1420
    %v1422 = vpop.xlane.xlu0 %1421
    %v1423 = vsel %vm267, %v1419, -inf
    %1424 = vmax.xlane.f32.xlu0 %v1423
    %v1425 = vpop.xlane.xlu0 %1424
    %v1426 = vsub.f32 %v1418, %v1422
    %v1427 = vsub.f32 %v1419, %v1425
    %v1428 = vmul.f32 %v1426, 1.442695
    %v1429 = vpow.pop %v1428
    %v1430 = vmul.f32 %v1427, 1.442695
    %v1431 = vpow.pop %v1430
    %v1432 = vsel %vm267, %v1429, 0.0
    %1433 = vadd.xlane.f32.xlu0 %v1432
    %v1434 = vpop.xlane.xlu0 %1433
    %v1435 = vsel %vm267, %v1431, 0.0
    %1436 = vadd.xlane.f32.xlu0 %v1435
    %v1437 = vpop.xlane.xlu0 %1436
    %v1438 = vrcp.pop %v1434
    %v1439 = vmul.f32 %v1429, %v1438
    %v1440 = vrcp.pop %v1437
    %v1441 = vmul.f32 %v1431, %v1440
    %1442 = vrot.lane.b32.xlu0 %v265, 72
    %v1443 = vpop.permute.xlu0 %1442
    %v1446 = vsel %vm267, %v1439, 0
    %1448 = vmatprep.subr.mxu0 0.0
    %1449 = vmatpush1.msra.mxu0 %v1443
    %1450 = vmatprep.subr.mxu0 0.0
    %1451 = vmatpush1.msra.mxu0 0.0
    %1452 = vmatprep.subr.mxu0 0.0
    %1453 = vmatpush1.msra.mxu0 0.0
    %1454 = vmatprep.subr.mxu0 0.0
    %1455 = vmatpush1.msra.mxu0 0.0
    %1456 = vmatprep.subr.mxu0 0.0
    %1457 = vmatpush1.msra.mxu0 0.0
    %1458 = vmatprep.subr.mxu0 0.0
    %1459 = vmatpush1.msra.mxu0 0.0
    %1460 = vmatprep.subr.mxu0 0.0
    %1461 = vmatpush1.msra.mxu0 0.0
    %1462 = vmatprep.subr.mxu0 0.0
    %1463 = vmatpush1.msra.mxu0 0.0
    %1464 = vmatprep.subr.mxu0 0.0
    %1465 = vmatpush1.msra.mxu0 0.0
    %1466 = vmatprep.subr.mxu0 0.0
    %1467 = vmatpush1.msra.mxu0 0.0
    %1468 = vmatprep.subr.mxu0 0.0
    %1469 = vmatpush1.msra.mxu0 0.0
    %1470 = vmatprep.subr.mxu0 0.0
    %1471 = vmatpush1.msra.mxu0 0.0
    %1472 = vmatprep.subr.mxu0 0.0
    %1473 = vmatpush1.msra.mxu0 0.0
    %1474 = vmatprep.subr.mxu0 0.0
    %1475 = vmatpush1.msra.mxu0 0.0
    %1476 = vmatprep.subr.mxu0 0.0
    %1477 = vmatpush1.msra.mxu0 0.0
    %1478 = vmatprep.subr.mxu0 0.0
    %1479 = vmatpush1.msra.mxu0 0.0
    %1480 = vmatprep.subr.mxu0 0.0
    %1481 = vmatpush1.msra.mxu0 0.0
    %1482 = vmatprep.subr.mxu0 0.0
    %1483 = vmatpush1.msra.mxu0 0.0
    %1484 = vmatprep.subr.mxu0 0.0
    %1485 = vmatpush1.msra.mxu0 0.0
    %1486 = vmatprep.subr.mxu0 0.0
    %1487 = vmatpush1.msra.mxu0 0.0
    %1488 = vmatprep.subr.mxu0 0.0
    %1489 = vmatpush1.msra.mxu0 0.0
    %1490 = vmatprep.subr.mxu0 0.0
    %1491 = vmatpush1.msra.mxu0 0.0
    %1492 = vmatprep.subr.mxu0 0.0
    %1493 = vmatpush1.msra.mxu0 0.0
    %1494 = vmatprep.subr.mxu0 0.0
    %1495 = vmatpush1.msra.mxu0 0.0
    %1496 = vmatprep.subr.mxu0 0.0
    %1497 = vmatpush1.msra.mxu0 0.0
    %1498 = vmatprep.subr.mxu0 0.0
    %1499 = vmatpush1.msra.mxu0 0.0
    %1500 = vmatprep.subr.mxu0 0.0
    %1501 = vmatpush1.msra.mxu0 0.0
    %1502 = vmatprep.subr.mxu0 0.0
    %1503 = vmatpush1.msra.mxu0 0.0
    %1504 = vmatprep.subr.mxu0 0.0
    %1505 = vmatpush1.msra.mxu0 0.0
    %1506 = vmatprep.subr.mxu0 0.0
    %1507 = vmatpush1.msra.mxu0 0.0
    %1508 = vmatprep.subr.mxu0 0.0
    %1509 = vmatpush1.msra.mxu0 0.0
    %1510 = vmatprep.subr.mxu0 0.0
    %1511 = vmatpush1.msra.mxu0 0.0
    %1512 = vmatprep.mubr.f32.mxu0 0.0
    %1513 = vmatmul.mubr.f32.gmra.mrb[0].mxu0 %v1446
    %v1514 = vpop.f32.mrb[0].mxu0
    %v1515 = vadd.f32 0.0, %v1514
    %v1516 = vpop.f32.mrb[0].mxu0
    %1517 = vdwg.mxu0
    %1518 = vrot.lane.b32.xlu0 %v266, 72
    %v1519 = vpop.permute.xlu0 %1518
    %v1522 = vsel %vm267, %v1441, 0
    %1524 = vmatprep.subr.mxu0 0.0
    %1525 = vmatpush1.msra.mxu0 %v1519
    %1526 = vmatprep.subr.mxu0 0.0
    %1527 = vmatpush1.msra.mxu0 0.0
    %1528 = vmatprep.subr.mxu0 0.0
    %1529 = vmatpush1.msra.mxu0 0.0
    %1530 = vmatprep.subr.mxu0 0.0
    %1531 = vmatpush1.msra.mxu0 0.0
    %1532 = vmatprep.subr.mxu0 0.0
    %1533 = vmatpush1.msra.mxu0 0.0
    %1534 = vmatprep.subr.mxu0 0.0
    %1535 = vmatpush1.msra.mxu0 0.0
    %1536 = vmatprep.subr.mxu0 0.0
    %1537 = vmatpush1.msra.mxu0 0.0
    %1538 = vmatprep.subr.mxu0 0.0
    %1539 = vmatpush1.msra.mxu0 0.0
    %1540 = vmatprep.subr.mxu0 0.0
    %1541 = vmatpush1.msra.mxu0 0.0
    %1542 = vmatprep.subr.mxu0 0.0
    %1543 = vmatpush1.msra.mxu0 0.0
    %1544 = vmatprep.subr.mxu0 0.0
    %1545 = vmatpush1.msra.mxu0 0.0
    %1546 = vmatprep.subr.mxu0 0.0
    %1547 = vmatpush1.msra.mxu0 0.0
    %1548 = vmatprep.subr.mxu0 0.0
    %1549 = vmatpush1.msra.mxu0 0.0
    %1550 = vmatprep.subr.mxu0 0.0
    %1551 = vmatpush1.msra.mxu0 0.0
    %1552 = vmatprep.subr.mxu0 0.0
    %1553 = vmatpush1.msra.mxu0 0.0
    %1554 = vmatprep.subr.mxu0 0.0
    %1555 = vmatpush1.msra.mxu0 0.0
    %1556 = vmatprep.subr.mxu0 0.0
    %1557 = vmatpush1.msra.mxu0 0.0
    %1558 = vmatprep.subr.mxu0 0.0
    %1559 = vmatpush1.msra.mxu0 0.0
    %1560 = vmatprep.subr.mxu0 0.0
    %1561 = vmatpush1.msra.mxu0 0.0
    %1562 = vmatprep.subr.mxu0 0.0
    %1563 = vmatpush1.msra.mxu0 0.0
    %1564 = vmatprep.subr.mxu0 0.0
    %1565 = vmatpush1.msra.mxu0 0.0
    %1566 = vmatprep.subr.mxu0 0.0
    %1567 = vmatpush1.msra.mxu0 0.0
    %1568 = vmatprep.subr.mxu0 0.0
    %1569 = vmatpush1.msra.mxu0 0.0
    %1570 = vmatprep.subr.mxu0 0.0
    %1571 = vmatpush1.msra.mxu0 0.0
    %1572 = vmatprep.subr.mxu0 0.0
    %1573 = vmatpush1.msra.mxu0 0.0
    %1574 = vmatprep.subr.mxu0 0.0
    %1575 = vmatpush1.msra.mxu0 0.0
    %1576 = vmatprep.subr.mxu0 0.0
    %1577 = vmatpush1.msra.mxu0 0.0
    %1578 = vmatprep.subr.mxu0 0.0
    %1579 = vmatpush1.msra.mxu0 0.0
    %1580 = vmatprep.subr.mxu0 0.0
    %1581 = vmatpush1.msra.mxu0 0.0
    %1582 = vmatprep.subr.mxu0 0.0
    %1583 = vmatpush1.msra.mxu0 0.0
    %1584 = vmatprep.subr.mxu0 0.0
    %1585 = vmatpush1.msra.mxu0 0.0
    %1586 = vmatprep.subr.mxu0 0.0
    %1587 = vmatpush1.msra.mxu0 0.0
    %1588 = vmatprep.mubr.f32.mxu0 0.0
    %1589 = vmatmul.mubr.f32.gmra.mrb[0].mxu0 %v1522
    %v1590 = vpop.f32.mrb[0].mxu0
    %v1591 = vadd.f32 0.0, %v1590
    %v1592 = vpop.f32.mrb[0].mxu0
    %1593 = vdwg.mxu0
    %1596 = vrot.lane.b32.xlu0 %v851, 8
    %v1597 = vpop.permute.xlu0 %1596
    %1598 = vrot.lane.b32.xlu0 %v927, 8
    %v1599 = vpop.permute.xlu0 %1598
    %1604 = vrot.lane.b32.xlu0 %v1183, 16
    %v1605 = vpop.permute.xlu0 %1604
    %1606 = vrot.lane.b32.xlu0 %v1259, 16
    %v1607 = vpop.permute.xlu0 %1606
    %1612 = vrot.lane.b32.xlu0 %v1515, 24
    %v1613 = vpop.permute.xlu0 %1612
    %1614 = vrot.lane.b32.xlu0 %v1591, 24
    %v1615 = vpop.permute.xlu0 %1614
    %v1618 = vsel %vm267, %v518, %v1597
    %v1619 = vsel %vm267, %v595, %v1599
    %vm1620 = vcmask 130048
    %v1621 = vsel %vm1620, %v1618, %v1605
    %v1622 = vsel %vm1620, %v1619, %v1607
    %vm1623 = vcmask 195584
    %v1624 = vsel %vm1623, %v1621, %v1613
    %v1625 = vsel %vm1623, %v1622, %v1615
    %v1626 = vlaneseq
    %v1627 = vshrl.u32 %v1626, 7
    %v1628 = vsub.s32 3, %v1627
    %v1629 = vrot.slane %v67, %v1628
    %1630 = vrot.lane.b32.xlu0 %v63, 32
    %v1631 = vpop.permute.xlu0 %1630
    %1632 = vrot.lane.b32.xlu0 %v64, 32
    %v1633 = vpop.permute.xlu0 %1632
    %1634 = vrot.lane.b32.xlu0 %v65, 32
    %v1635 = vpop.permute.xlu0 %1634
    %1636 = vrot.lane.b32.xlu0 %v66, 32
    %v1637 = vpop.permute.xlu0 %1636
    %v1643 = vsel %vm72, %v1624, 0
    %v1646 = vsel %vm72, %v1625, 0
    %1648 = vmatprep.subr.mxu0 0.0
    %1649 = vmatpush1.msra.mxu0 %v1631
    %1650 = vmatprep.subr.mxu0 0.0
    %1651 = vmatpush1.msra.mxu0 %v1633
    %1652 = vmatprep.subr.mxu0 0.0
    %1653 = vmatpush1.msra.mxu0 %v1635
    %1654 = vmatprep.subr.mxu0 0.0
    %1655 = vmatpush1.msra.mxu0 %v1637
    %1656 = vmatprep.subr.mxu0 0.0
    %1657 = vmatpush1.msra.mxu0 0.0
    %1658 = vmatprep.subr.mxu0 0.0
    %1659 = vmatpush1.msra.mxu0 0.0
    %1660 = vmatprep.subr.mxu0 0.0
    %1661 = vmatpush1.msra.mxu0 0.0
    %1662 = vmatprep.subr.mxu0 0.0
    %1663 = vmatpush1.msra.mxu0 0.0
    %1664 = vmatprep.subr.mxu0 0.0
    %1665 = vmatpush1.msra.mxu0 0.0
    %1666 = vmatprep.subr.mxu0 0.0
    %1667 = vmatpush1.msra.mxu0 0.0
    %1668 = vmatprep.subr.mxu0 0.0
    %1669 = vmatpush1.msra.mxu0 0.0
    %1670 = vmatprep.subr.mxu0 0.0
    %1671 = vmatpush1.msra.mxu0 0.0
    %1672 = vmatprep.subr.mxu0 0.0
    %1673 = vmatpush1.msra.mxu0 0.0
    %1674 = vmatprep.subr.mxu0 0.0
    %1675 = vmatpush1.msra.mxu0 0.0
    %1676 = vmatprep.subr.mxu0 0.0
    %1677 = vmatpush1.msra.mxu0 0.0
    %1678 = vmatprep.subr.mxu0 0.0
    %1679 = vmatpush1.msra.mxu0 0.0
    %1680 = vmatprep.subr.mxu0 0.0
    %1681 = vmatpush1.msra.mxu0 0.0
    %1682 = vmatprep.subr.mxu0 0.0
    %1683 = vmatpush1.msra.mxu0 0.0
    %1684 = vmatprep.subr.mxu0 0.0
    %1685 = vmatpush1.msra.mxu0 0.0
    %1686 = vmatprep.subr.mxu0 0.0
    %1687 = vmatpush1.msra.mxu0 0.0
    %1688 = vmatprep.subr.mxu0 0.0
    %1689 = vmatpush1.msra.mxu0 0.0
    %1690 = vmatprep.subr.mxu0 0.0
    %1691 = vmatpush1.msra.mxu0 0.0
    %1692 = vmatprep.subr.mxu0 0.0
    %1693 = vmatpush1.msra.mxu0 0.0
    %1694 = vmatprep.subr.mxu0 0.0
    %1695 = vmatpush1.msra.mxu0 0.0
    %1696 = vmatprep.subr.mxu0 0.0
    %1697 = vmatpush1.msra.mxu0 0.0
    %1698 = vmatprep.subr.mxu0 0.0
    %1699 = vmatpush1.msra.mxu0 0.0
    %1700 = vmatprep.subr.mxu0 0.0
    %1701 = vmatpush1.msra.mxu0 0.0
    %1702 = vmatprep.subr.mxu0 0.0
    %1703 = vmatpush1.msra.mxu0 0.0
    %1704 = vmatprep.subr.mxu0 0.0
    %1705 = vmatpush1.msra.mxu0 0.0
    %1706 = vmatprep.subr.mxu0 0.0
    %1707 = vmatpush1.msra.mxu0 0.0
    %1708 = vmatprep.subr.mxu0 0.0
    %1709 = vmatpush1.msra.mxu0 0.0
    %1710 = vmatprep.subr.mxu0 0.0
    %1711 = vmatpush1.msra.mxu0 0.0
    %1712 = vmatprep.mubr.f32.mxu0 0.0
    %1713 = vmatmul.mubr.f32.gmra.mrb[0].mxu0 %v1643
    %v1714 = vpop.f32.mrb[0].mxu0
    %v1715 = vadd.f32 %v1629, %v1714
    %v1716 = vpop.f32.mrb[0].mxu0
    %1717 = vmatprep.mubr.f32.mxu0 0.0
    %1718 = vmatmul.mubr.f32.gmra.mrb[0].mxu0 %v1646
    %v1719 = vpop.f32.mrb[0].mxu0
    %v1720 = vadd.f32 %v1629, %v1719
    %v1721 = vpop.f32.mrb[0].mxu0
    %1722 = vdwg.mxu0
    %v1723 = vadd.f32 %v59, %v1715
    %v1724 = vadd.f32 %v60, %v1720
    %v1725 = vsel %vm72, %v1723, 0.0
    %1726 = vadd.xlane.f32.xlu0 %v1725
    %v1727 = vpop.xlane.xlu0 %1726
    %v1728 = vsel %vm72, %v1724, 0.0
    %1729 = vadd.xlane.f32.xlu0 %v1728
    %v1730 = vpop.xlane.xlu0 %1729
    %v1731 = vrcp.pop 32.0
    %v1732 = vmul.f32 %v1727, %v1731
    %v1733 = vmul.f32 %v1730, %v1731
    %v1734 = vsub.f32 %v1723, %v1732
    %v1735 = vsub.f32 %v1724, %v1733
    %v1736 = vmul.f32 %v1734, %v1734
    %v1737 = vmul.f32 %v1735, %v1735
    %v1738 = vsel %vm72, %v1736, 0.0
    %1739 = vadd.xlane.f32.xlu0 %v1738
    %v1740 = vpop.xlane.xlu0 %1739
    %v1741 = vsel %vm72, %v1737, 0.0
    %1742 = vadd.xlane.f32.xlu0 %v1741
    %v1743 = vpop.xlane.xlu0 %1742
    %v1744 = vmul.f32 %v1740, %v1731
    %v1745 = vmul.f32 %v1743, %v1731
    %v1746 = vadd.f32 %v1744, 1e-12
    %v1747 = vadd.f32 %v1745, 1e-12
    %v1748 = vrsqrt.pop %v1746
    %v1749 = vrsqrt.pop %v1747
    %v1750 = vmul.f32 %v1734, %v1748
    %v1751 = vmul.f32 %v1735, %v1749
    %v1752 = vlaneseq
    %v1753 = vshrl.u32 %v1752, 7
    %v1754 = vsub.s32 4, %v1753
    %v1755 = vrot.slane %v67, %v1754
    %v1756 = vmul.f32 %v1750, %v1755
    %v1757 = vmul.f32 %v1751, %v1755
    %v1758 = vlaneseq
    %v1759 = vshrl.u32 %v1758, 7
    %v1760 = vsub.s32 5, %v1759
    %v1761 = vrot.slane %v67, %v1760
    %v1762 = vadd.f32 %v1756, %v1761
    %v1763 = vadd.f32 %v1757, %v1761
    %1764 = vst.msk [vmem:[#allocation8] sm:$0xff] %vm72, %v1762
    %1765 = vst.msk [vmem:[#allocation8 + $0x8] sm:$0xff] %vm72, %v1763
    // Predicated region
    $region30: #{tpu_custom_call.1} parent=1 // pred_check
      _
    $region31: #{tpu_custom_call.1} parent=1 // pred_check_branch
      %1767 = sbr.rel (0) target = $region33
    $region32: #{tpu_custom_call.1} parent=1 // pred_region
      %s1769 = ssub.s32 256, 256
      %1770 = vsyncadd [#allocation4], %s1769
      %s1771 = sshll.u32 [#allocation8], 4
      %s1772 = int_to_ptr.vmem [resolvable:$true] %s1771
      %1777 = dma.vmem_to_hbm [thread:$0]  %s1772, 256, %s4, [#allocation4], 128, 128, 8
    $region33: #{tpu_custom_call.1} parent=1 // pred_fallthru
      _
    // Predicated region
    $region34: #{tpu_custom_call.1} parent=1 // pred_check
      _
    $region35: #{tpu_custom_call.1} parent=1 // pred_check_branch
      %1779 = sbr.rel (0) target = $region37
    $region36: #{tpu_custom_call.1} parent=1 // pred_region
      %1780 = dma.done [#allocation4], 256
    $region37: #{tpu_custom_call.1} parent=1 // pred_fallthru
      _
    %1781 = vsyncpa [#allocation3], 1
    %1782 = vsyncpa [#allocation6], 1
    %1783 = vsyncpa [#allocation4], 1

</llo_original>
